<compile_context>
chip_gen: v7x
topology: tpu7x:2x2x1
jax: 0.10.0
libtpu: 0.0.40
codegen_flags: <defaults>
</compile_context>

<pallas_src>
import functools
import math

import jax
import jax.numpy as jnp
from jax.experimental import pallas as pl
from jax.experimental.pallas import tpu as pltpu


# ----------------------------------------------------------------------------
# Pallas kernel: one grid step = G windows, flattened to a (G*N, C) slab.
# ----------------------------------------------------------------------------
def _lwa_kernel(*refs, windows_per_block, num_heads, windows_per_batch, has_mask):
    if has_mask:
        (x_ref, wqkv_ref, bqkv_ref, wproj_ref, bproj_ref,
         rel_ref, mask_ref, o_ref, ctx_ref) = refs
    else:
        (x_ref, wqkv_ref, bqkv_ref, wproj_ref, bproj_ref,
         rel_ref, o_ref, ctx_ref) = refs
        mask_ref = None

    G = windows_per_block
    H = num_heads
    GN, C = x_ref.shape
    N = GN // G
    Dh = C // H
    bf16 = jnp.bfloat16
    f32 = jnp.float32

    # Fused qkv projection.  LoRA adapters and the qk scale were folded into
    # wqkv / bqkv at setup time (eval-mode dropouts are identity).
    x = x_ref[...]                                                # (G*N, C) bf16
    qkv = jnp.dot(x, wqkv_ref[...], preferred_element_type=f32)
    qkv = (qkv + bqkv_ref[0]).astype(bf16)                        # cast ONCE: halves live footprint
    qkv = qkv.reshape(G, N, 3 * C)                                # single major-dim reshape

    # Per-window additive mask for this block, taken from the VMEM-resident
    # (nW, N, N) mask (never tiled / streamed from HBM).
    if has_mask:
        nW = windows_per_batch
        if G % nW == 0:                      # block covers whole batches
            reps = G // nW
            m = mask_ref[...]
            mask_blk = m if reps == 1 else jnp.broadcast_to(
                m[None], (reps, nW, N, N)).reshape(G, N, N)
        else:                                # nW % G == 0: G consecutive windows
            start = (pl.program_id(0) * G) % nW
            mask_blk = mask_ref[pl.ds(start, G)]
    else:
        mask_blk = None

    # Static head unroll; every stage is a window-batched MXU einsum.
    # TODO(synk): collapse the head loop into a single 2-batch-dim einsum pair
    # ('ghnd,ghmd->ghnm' / 'ghnm,ghmd->ghnd') once Mosaic dot_general reliably
    # lowers multiple batch dims; kept as a static unroll of single-batch-dim
    # einsums for lowering portability.
    for h in range(H):
        lo = h * Dh
        q = qkv[:, :, 0 * C + lo:0 * C + lo + Dh]                 # (G, N, Dh) bf16
        k = qkv[:, :, 1 * C + lo:1 * C + lo + Dh]
        v = qkv[:, :, 2 * C + lo:2 * C + lo + Dh]

        # Scores for all G windows at once; contraction over the last dims,
        # so no explicit k.T / transpose is emitted.
        s = jnp.einsum("gnd,gmd->gnm", q, k,
                       preferred_element_type=f32)                # (G, N, N) f32
        s = s + rel_ref[h]                                        # rel-pos bias (resident)
        if has_mask:
            s = s + mask_blk                                      # shifted-window mask

        # f32 softmax (v5e has no bf16 VALU/EUP); divide goes to the EUP.
        s = s - jnp.max(s, axis=-1, keepdims=True)
        p = jnp.exp(s)
        p = p * pl.reciprocal(jnp.sum(p, axis=-1, keepdims=True), approx=True)

        ctx = jnp.einsum("gnm,gmd->gnd", p.astype(bf16), v,
                         preferred_element_type=f32)              # (G, N, Dh)
        # Stage this head's context into the merged-heads scratch (bf16).
        ctx_ref[:, lo:lo + Dh] = ctx.reshape(GN, Dh).astype(bf16)

    # ONE full-K (C-deep) output projection for all heads (fills the MXU once
    # instead of H times with K = Dh); proj bias folded into the same result.
    out = jnp.dot(ctx_ref[...], wproj_ref[...], preferred_element_type=f32)
    o_ref[...] = (out + bproj_ref[0]).astype(o_ref.dtype)


# ----------------------------------------------------------------------------
# Block-size selection: biggest window batch G (divisor of num_windows) whose
# per-step footprint fits the remaining VMEM budget (after residents), keeping
# >= 4 grid steps where possible (>= 2 per v7x TensorCore) so input/output DMAs
# stay pipelined, and respecting the (8, 128) block alignment rule.
# ----------------------------------------------------------------------------
def _pick_block_windows(num_windows, tokens, channels, windows_per_batch,
                        budget_bytes, max_windows=256):
    def step_bytes(g):
        gn = g * tokens
        b = 2 * gn * channels * 2            # x block, bf16, double buffered
        b += 2 * gn * channels * 2           # out block, bf16, double buffered
        b += gn * 3 * channels * (4 + 2)     # qkv f32 matmul result + bf16 copy
        b += 3 * g * tokens * tokens * 4     # scores + probs (one head live) + mask block
        b += gn * channels * 2               # ctx scratch (bf16)
        b += gn * channels * 4               # projection result (f32)
        return b

    cands = []
    for d in range(1, num_windows + 1):
        if num_windows % d:
            continue
        if d > max_windows:
            continue
        if (d * tokens) % 8 and d != num_windows:
            continue                                      # keep blocks sublane aligned
        if windows_per_batch and not (d % windows_per_batch == 0
                                      or windows_per_batch % d == 0):
            continue                                      # mask slice must be expressible
        if d > 1 and step_bytes(d) > budget_bytes:
            continue
        cands.append(d)
    if not cands:
        return 1
    for min_steps in (4, 2):                              # prefer pipelined grids
        ok = [d for d in cands if num_windows // d >= min_steps]
        if ok:
            return max(ok)
    return max(cands)


# ----------------------------------------------------------------------------
# One-time (eval) parameter transform: fold LoRA + qk scale into the fused qkv
# weights, pre-gather the relative-position bias, cast matmul weights to bf16.
# ----------------------------------------------------------------------------
def fold_params(params, window_size, num_heads, qk_scale=None, lora_alpha=16):
    wqkv = params["wqkv"].astype(jnp.float32)                    # (C, 3C)
    bqkv = params["bqkv"].astype(jnp.float32).reshape(-1)        # (3C,)
    C = wqkv.shape[0]
    Dh = C // num_heads
    scale = qk_scale or Dh ** (-0.5)
    r = params["wqa"].shape[1]
    lora_scaling = lora_alpha / r

    dq = lora_scaling * (params["wqa"] @ params["wqb"])          # (C, C)
    dv = lora_scaling * (params["wva"] @ params["wvb"])          # (C, C)

    wq = (wqkv[:, 0 * C:1 * C] + dq) * scale
    wk = wqkv[:, 1 * C:2 * C]
    wv = wqkv[:, 2 * C:3 * C] + dv
    wqkv_f = jnp.concatenate([wq, wk, wv], axis=1)

    bq = bqkv[0 * C:1 * C] * scale
    bk = bqkv[1 * C:2 * C]
    bv = bqkv[2 * C:3 * C]
    bqkv_f = jnp.concatenate([bq, bk, bv])[None, :]              # (1, 3C)

    Wh, Ww = window_size
    N = Wh * Ww
    rel_index = _relative_position_index(Wh, Ww)                 # (N, N)
    rel_bias = params["rel_bias_table"][rel_index.reshape(-1)]
    rel_bias = rel_bias.reshape(N, N, num_heads).transpose(2, 0, 1)   # (H, N, N)

    return {
        "wqkv": wqkv_f.astype(jnp.bfloat16),
        "bqkv": bqkv_f.astype(jnp.float32),
        "wproj": params["wproj"].astype(jnp.bfloat16),
        "bproj": params["bproj"].astype(jnp.float32),
        "rel_bias": rel_bias.astype(jnp.float32),
    }


# ----------------------------------------------------------------------------
# Wrapper: padding, BlockSpecs / grid, VMEM sizing, pallas_call.
# ----------------------------------------------------------------------------
def lora_window_attention(x, folded, mask=None, vmem_limit_bytes=32 << 20):
    """x: (B_, N, C); mask: optional (nW, N, N) additive 0/-100 mask.
    Returns bf16 (B_, N, C).  Assumes rows are batch-major / window-minor
    (standard Swin layout: row index = b * nW + w)."""
    B_, N, C = x.shape
    rel = folded["rel_bias"]
    H = rel.shape[0]
    assert rel.shape == (H, N, N) and C % H == 0

    xb = x.astype(jnp.bfloat16)                   # bf16 activation HBM traffic
    mask_f = None
    nW = 0
    if mask is not None:
        nW = mask.shape[0]
        assert mask.shape == (nW, N, N) and B_ % nW == 0
        mask_f = mask.astype(jnp.float32)

    # Pad tokens to a sublane multiple (Swin 7x7: 49 -> 56); padded keys get a
    # -1e9 additive bias, padded query rows are sliced away after the kernel.
    Np = 8 * ((N + 7) // 8)
    pad = Np - N
    if pad:
        xb = jnp.pad(xb, ((0, 0), (0, pad), (0, 0)))
        rel = jnp.pad(rel, ((0, 0), (0, pad), (0, pad)))
        rel = rel.at[:, :, N:].add(-1e9)
        if mask_f is not None:
            mask_f = jnp.pad(mask_f, ((0, 0), (0, pad), (0, pad)))

    wqkv, bqkv = folded["wqkv"], folded["bqkv"]
    wproj, bproj = folded["wproj"], folded["bproj"]

    def nbytes(a):
        return a.size * a.dtype.itemsize

    residents = [wqkv, bqkv, wproj, bproj, rel]
    if mask_f is not None:
        residents.append(mask_f)
    resident_bytes = 2 * sum(nbytes(a) for a in residents)   # default double buffering
    budget = int(0.70 * vmem_limit_bytes) - resident_bytes   # headroom for compiler temps

    G = _pick_block_windows(B_, Np, C, nW, budget)
    if mask_f is not None:
        assert G % nW == 0 or nW % G == 0
    grid = (B_ // G,)

    x2d = xb.reshape(B_ * Np, C)

    def resident_spec(arr):
        nd = arr.ndim
        # NOTE: pipeline_mode=pl.Buffered(1) would single-buffer these
        # grid-invariant blocks (VMEM saving, mainly on v7x); left at the
        # default buffering for lowering portability.
        return pl.BlockSpec(arr.shape, lambda g, _nd=nd: (0,) * _nd)

    in_specs = [
        pl.BlockSpec((G * Np, C), lambda g: (g, 0)),     # x slab
        resident_spec(wqkv), resident_spec(bqkv),        # fused qkv weight/bias
        resident_spec(wproj), resident_spec(bproj),      # proj weight/bias
        resident_spec(rel),                              # rel-pos bias (H, N, N)
    ]
    inputs = [x2d, wqkv, bqkv, wproj, bproj, rel]
    if mask_f is not None:
        in_specs.append(resident_spec(mask_f))           # resident (nW, N, N) mask
        inputs.append(mask_f)

    kernel = functools.partial(
        _lwa_kernel, windows_per_block=G, num_heads=H,
        windows_per_batch=max(nW, 1), has_mask=mask_f is not None)

    out2d = pl.pallas_call(
        kernel,
        out_shape=jax.ShapeDtypeStruct((B_ * Np, C), jnp.bfloat16),
        grid=grid,
        in_specs=in_specs,
        out_specs=pl.BlockSpec((G * Np, C), lambda g: (g, 0)),
        scratch_shapes=[pltpu.VMEM((G * Np, C), jnp.bfloat16)],   # merged-heads ctx
        compiler_params=pltpu.CompilerParams(
            dimension_semantics=("parallel",),
            vmem_limit_bytes=vmem_limit_bytes),
    )(*inputs)

    out = out2d.reshape(B_, Np, C)
    if pad:
        out = out[:, :N, :]
    return out


def _relative_position_index(Wh, Ww):
    coords_h = jnp.arange(Wh)
    coords_w = jnp.arange(Ww)
    coords = jnp.stack(jnp.meshgrid(coords_h, coords_w, indexing="ij"))  # (2,Wh,Ww)
    coords_flat = coords.reshape(2, -1)                                  # (2, N)
    rel = coords_flat[:, :, None] - coords_flat[:, None, :]              # (2, N, N)
    rel = rel.transpose(1, 2, 0)                                         # (N, N, 2)
    rel = rel.at[:, :, 0].add(Wh - 1)
    rel = rel.at[:, :, 1].add(Ww - 1)
    rel = rel.at[:, :, 0].multiply(2 * Ww - 1)
    return rel.sum(-1)                                                   # (N, N)


# ----------------------------------------------------------------------------
# Pure-JAX f32 reference (mirrors the PyTorch forward, unfolded weights).
# ----------------------------------------------------------------------------
def reference(x, params, window_size, num_heads, mask=None,
              qk_scale=None, lora_alpha=16):
    B_, N, C = x.shape
    H = num_heads
    Dh = C // H
    scale = qk_scale or Dh ** (-0.5)
    r = params["wqa"].shape[1]
    lora_scaling = lora_alpha / r

    qkv = x @ params["wqkv"] + params["bqkv"][0]                    # (B_, N, 3C)
    qkv = qkv.reshape(B_, N, 3, H, Dh).transpose(2, 0, 3, 1, 4)
    q, k, v = qkv[0], qkv[1], qkv[2]                                # (B_, H, N, Dh)

    q_lora = lora_scaling * ((x @ params["wqa"]) @ params["wqb"])
    v_lora = lora_scaling * ((x @ params["wva"]) @ params["wvb"])
    q = q + q_lora.reshape(B_, N, H, Dh).transpose(0, 2, 1, 3)
    v = v + v_lora.reshape(B_, N, H, Dh).transpose(0, 2, 1, 3)

    q = q * scale
    attn = jnp.einsum("bhnd,bhmd->bhnm", q, k)

    Wh, Ww = window_size
    rel_index = _relative_position_index(Wh, Ww)
    rel_bias = params["rel_bias_table"][rel_index.reshape(-1)]
    rel_bias = rel_bias.reshape(N, N, H).transpose(2, 0, 1)
    attn = attn + rel_bias[None]

    if mask is not None:
        nW = mask.shape[0]
        attn = attn.reshape(B_ // nW, nW, H, N, N) + mask[None, :, None]
        attn = attn.reshape(B_, H, N, N)

    attn = jax.nn.softmax(attn, axis=-1)
    out = jnp.einsum("bhnm,bhmd->bhnd", attn, v)
    out = out.transpose(0, 2, 1, 3).reshape(B_, N, C)
    out = out @ params["wproj"] + params["bproj"][0]
    return out


# ----------------------------------------------------------------------------
# Deterministic parameter construction (shapes match the module __init__).
# LoRA B matrices get nonzero values so the LoRA path is exercised.
# ----------------------------------------------------------------------------
def make_params(key, dim, num_heads, window_size, lora_rank):
    Wh, Ww = window_size
    ks = jax.random.split(key, 9)
    f32 = jnp.float32
    return {
        "wqkv": jax.random.normal(ks[0], (dim, 3 * dim), f32) * 0.05,
        "bqkv": jax.random.normal(ks[1], (1, 3 * dim), f32) * 0.02,
        "wqa": jax.random.normal(ks[2], (dim, lora_rank), f32)
               * (1.0 / math.sqrt(dim)),
        "wqb": jax.random.normal(ks[3], (lora_rank, dim), f32) * 0.05,
        "wva": jax.random.normal(ks[4], (dim, lora_rank), f32)
               * (1.0 / math.sqrt(dim)),
        "wvb": jax.random.normal(ks[5], (lora_rank, dim), f32) * 0.05,
        "wproj": jax.random.normal(ks[6], (dim, dim), f32) * 0.05,
        "bproj": jax.random.normal(ks[7], (1, dim), f32) * 0.02,
        "rel_bias_table": jax.random.normal(
            ks[8], ((2 * Wh - 1) * (2 * Ww - 1), num_heads), f32) * 0.02,
    }


if __name__ == "__main__":
    def run_case(name, dim, num_heads, window_size, lora_rank, lora_alpha,
                 batch, num_win, seed, with_mask):
        Wh, Ww = window_size
        N = Wh * Ww
        B_ = batch * num_win
        key = jax.random.fold_in(jax.random.PRNGKey(0), seed)
        kx, kp, km = jax.random.split(key, 3)

        # bf16-representable inputs so the bf16 kernel path and the f32
        # reference see identical input values.
        x = jax.random.normal(kx, (B_, N, dim), jnp.float32)
        x = x.astype(jnp.bfloat16).astype(jnp.float32)

        params = make_params(kp, dim, num_heads, window_size, lora_rank)
        mask = None
        if with_mask:
            # shifted-window-style mask: 0 / -100 per window
            mask = jnp.where(jax.random.bernoulli(km, 0.2, (num_win, N, N)),
                             jnp.float32(-100.0), jnp.float32(0.0))

        # one-time eval-mode fold (LoRA + qk scale into bf16 fused weights)
        folded = fold_params(params, window_size, num_heads,
                             qk_scale=None, lora_alpha=lora_alpha)

        out = lora_window_attention(x, folded, mask=mask)
        out = jax.block_until_ready(out).astype(jnp.float32)

        ref = reference(x, params, window_size, num_heads, mask=mask,
                        lora_alpha=lora_alpha)

        # bf16 matmuls / bf16 output store / approx reciprocal vs f32 reference
        # -> relaxed tolerance.
        if not jnp.allclose(out, ref, atol=3e-2, rtol=3e-2):
            err = float(jnp.max(jnp.abs(out - ref)))
            raise AssertionError(
                f"{name}: kernel/reference mismatch (max abs err {err:.5f})")

    # 4x4 windows (N=16, already sublane aligned): no-mask and masked.
    run_case("4x4/nomask", dim=32, num_heads=4, window_size=(4, 4),
             lora_rank=16, lora_alpha=16, batch=4, num_win=4, seed=1,
             with_mask=False)
    run_case("4x4/mask", dim=32, num_heads=4, window_size=(4, 4),
             lora_rank=16, lora_alpha=16, batch=4, num_win=4, seed=2,
             with_mask=True)
    # Swin-style 7x7 windows (N=49 -> padded to 56), masked; exercises the
    # token-padding path and the dynamic mask-slice path (G < nW).
    run_case("7x7/mask", dim=32, num_heads=4, window_size=(7, 7),
             lora_rank=8, lora_alpha=16, batch=2, num_win=4, seed=3,
             with_mask=True)

    print("KERNEL_OK")
</pallas_src>

<mosaic_0001>
module attributes {stable_mosaic.version = 11 : i64} {
  func.func @_lwa_kernel(%arg0: i32, %arg1: memref<64x32xbf16, #tpu.memory_space<vmem>>, %arg2: memref<32x96xbf16, #tpu.memory_space<vmem>>, %arg3: memref<1x96xf32, #tpu.memory_space<vmem>>, %arg4: memref<32x32xbf16, #tpu.memory_space<vmem>>, %arg5: memref<1x32xf32, #tpu.memory_space<vmem>>, %arg6: memref<4x16x16xf32, #tpu.memory_space<vmem>>, %arg7: memref<64x32xbf16, #tpu.memory_space<vmem>>, %arg8: memref<64x32xbf16, #tpu.memory_space<vmem>>) attributes {dimension_semantics = [#tpu.dimension_semantics<parallel>], iteration_bounds = array<i64: 4>, scalar_prefetch = 0 : i64, scratch_operands = 1 : i64, tpu.core_type = #tpu.core_type<tc>, window_params = [{transform_indices = @transform_0, window_bounds = array<i64: 64, 32>}, {pipeline_mode = #tpu.pipeline_mode<synchronous>, transform_indices = @transform_1, window_bounds = array<i64: 32, 96>}, {pipeline_mode = #tpu.pipeline_mode<synchronous>, transform_indices = @transform_2, window_bounds = array<i64: 1, 96>}, {pipeline_mode = #tpu.pipeline_mode<synchronous>, transform_indices = @transform_3, window_bounds = array<i64: 32, 32>}, {pipeline_mode = #tpu.pipeline_mode<synchronous>, transform_indices = @transform_4, window_bounds = array<i64: 1, 32>}, {pipeline_mode = #tpu.pipeline_mode<synchronous>, transform_indices = @transform_5, window_bounds = array<i64: 4, 16, 16>}, {transform_indices = @transform_6, window_bounds = array<i64: 64, 32>}]} {
    %c0 = arith.constant 0 : index
    %c0_0 = arith.constant 0 : index
    %0 = vector.load %arg1[%c0, %c0_0] : memref<64x32xbf16, #tpu.memory_space<vmem>>, vector<64x32xbf16>
    %c0_1 = arith.constant 0 : index
    %c0_2 = arith.constant 0 : index
    %1 = vector.load %arg2[%c0_1, %c0_2] : memref<32x96xbf16, #tpu.memory_space<vmem>>, vector<32x96xbf16>
    %cst = arith.constant dense<0.000000e+00> : vector<64x96xf32>
    %2 = tpu.matmul %0, %1, %cst {dimension_numbers = #tpu.dot_dimension_numbers<[1], [0], [0], [1], [0, 0, 1, 1], [], []>} : vector<64x32xbf16>, vector<32x96xbf16>, vector<64x96xf32> -> vector<64x96xf32>
    %c0_3 = arith.constant 0 : index
    %c0_4 = arith.constant 0 : index
    %3 = vector.load %arg3[%c0_3, %c0_4] : memref<1x96xf32, #tpu.memory_space<vmem>>, vector<1x96xf32>
    %4 = vector.shape_cast %3 : vector<1x96xf32> to vector<96xf32>
    %5 = vector.shape_cast %4 : vector<96xf32> to vector<1x96xf32>
    %6 = vector.broadcast %5 : vector<1x96xf32> to vector<64x96xf32>
    %7 = arith.addf %2, %6 : vector<64x96xf32>
    %8 = arith.truncf %7 : vector<64x96xf32> to vector<64x96xbf16>
    %9 = vector.shape_cast %8 : vector<64x96xbf16> to vector<4x16x96xbf16>
    %10 = vector.extract_strided_slice %9 {offsets = [0, 0, 0], sizes = [4, 16, 8], strides = [1, 1, 1]} : vector<4x16x96xbf16> to vector<4x16x8xbf16>
    %11 = vector.extract_strided_slice %9 {offsets = [0, 0, 32], sizes = [4, 16, 8], strides = [1, 1, 1]} : vector<4x16x96xbf16> to vector<4x16x8xbf16>
    %12 = vector.extract_strided_slice %9 {offsets = [0, 0, 64], sizes = [4, 16, 8], strides = [1, 1, 1]} : vector<4x16x96xbf16> to vector<4x16x8xbf16>
    "tpu.trace_start"() <{level = 10 : i32, message = "gnd,gmd->gnm"}> : () -> ()
    %cst_5 = arith.constant dense<0.000000e+00> : vector<4x16x16xf32>
    %13 = tpu.matmul %10, %11, %cst_5 {dimension_numbers = #tpu.dot_dimension_numbers<[2], [2], [1], [1], [0, 0, 0, 1, 1, 1], [0], [0]>} : vector<4x16x8xbf16>, vector<4x16x8xbf16>, vector<4x16x16xf32> -> vector<4x16x16xf32>
    "tpu.trace_stop"() : () -> ()
    %c0_6 = arith.constant 0 : index
    %c0_7 = arith.constant 0 : index
    %c0_8 = arith.constant 0 : index
    %14 = vector.load %arg6[%c0_6, %c0_7, %c0_8] : memref<4x16x16xf32, #tpu.memory_space<vmem>>, vector<1x16x16xf32>
    %15 = vector.shape_cast %14 : vector<1x16x16xf32> to vector<16x16xf32>
    %16 = vector.shape_cast %15 : vector<16x16xf32> to vector<1x16x16xf32>
    %17 = vector.broadcast %16 : vector<1x16x16xf32> to vector<4x16x16xf32>
    %18 = arith.addf %13, %17 : vector<4x16x16xf32>
    %cst_9 = arith.constant dense<0xFF800000> : vector<4x16xf32>
    %19 = vector.multi_reduction <maximumf>, %18, %cst_9 [2] : vector<4x16x16xf32> to vector<4x16xf32>
    %20 = vector.shape_cast %19 : vector<4x16xf32> to vector<4x16x1xf32>
    %21 = vector.broadcast %20 : vector<4x16x1xf32> to vector<4x16x16xf32>
    %22 = arith.subf %18, %21 : vector<4x16x16xf32>
    %23 = math.exp %22 : vector<4x16x16xf32>
    %cst_10 = arith.constant dense<0.000000e+00> : vector<4x16xf32>
    %24 = vector.multi_reduction <add>, %23, %cst_10 [2] : vector<4x16x16xf32> to vector<4x16xf32>
    %25 = vector.shape_cast %24 : vector<4x16xf32> to vector<4x16x1xf32>
    %26 = tpu.reciprocal %25 {approx = true} : vector<4x16x1xf32> -> vector<4x16x1xf32>
    %27 = vector.broadcast %26 : vector<4x16x1xf32> to vector<4x16x16xf32>
    %28 = arith.mulf %23, %27 : vector<4x16x16xf32>
    %29 = arith.truncf %28 : vector<4x16x16xf32> to vector<4x16x16xbf16>
    "tpu.trace_start"() <{level = 10 : i32, message = "gnm,gmd->gnd"}> : () -> ()
    %cst_11 = arith.constant dense<0.000000e+00> : vector<4x16x8xf32>
    %30 = tpu.matmul %29, %12, %cst_11 {dimension_numbers = #tpu.dot_dimension_numbers<[2], [1], [1], [2], [0, 0, 0, 1, 1, 2], [0], [0]>} : vector<4x16x16xbf16>, vector<4x16x8xbf16>, vector<4x16x8xf32> -> vector<4x16x8xf32>
    "tpu.trace_stop"() : () -> ()
    %31 = vector.shape_cast %30 : vector<4x16x8xf32> to vector<64x8xf32>
    %32 = arith.truncf %31 : vector<64x8xf32> to vector<64x8xbf16>
    %c0_12 = arith.constant 0 : index
    %c0_13 = arith.constant 0 : index
    %33 = vector.load %arg8[%c0_12, %c0_13] : memref<64x32xbf16, #tpu.memory_space<vmem>>, vector<64x8xbf16>
    tpu.vector_store %arg8[%c0_12, %c0_13], %32 {strides = array<i32>} : memref<64x32xbf16, #tpu.memory_space<vmem>>, vector<64x8xbf16>,
    %34 = vector.extract_strided_slice %9 {offsets = [0, 0, 8], sizes = [4, 16, 8], strides = [1, 1, 1]} : vector<4x16x96xbf16> to vector<4x16x8xbf16>
    %35 = vector.extract_strided_slice %9 {offsets = [0, 0, 40], sizes = [4, 16, 8], strides = [1, 1, 1]} : vector<4x16x96xbf16> to vector<4x16x8xbf16>
    %36 = vector.extract_strided_slice %9 {offsets = [0, 0, 72], sizes = [4, 16, 8], strides = [1, 1, 1]} : vector<4x16x96xbf16> to vector<4x16x8xbf16>
    "tpu.trace_start"() <{level = 10 : i32, message = "gnd,gmd->gnm"}> : () -> ()
    %cst_14 = arith.constant dense<0.000000e+00> : vector<4x16x16xf32>
    %37 = tpu.matmul %34, %35, %cst_14 {dimension_numbers = #tpu.dot_dimension_numbers<[2], [2], [1], [1], [0, 0, 0, 1, 1, 1], [0], [0]>} : vector<4x16x8xbf16>, vector<4x16x8xbf16>, vector<4x16x16xf32> -> vector<4x16x16xf32>
    "tpu.trace_stop"() : () -> ()
    %c1 = arith.constant 1 : index
    %c0_15 = arith.constant 0 : index
    %c0_16 = arith.constant 0 : index
    %38 = vector.load %arg6[%c1, %c0_15, %c0_16] : memref<4x16x16xf32, #tpu.memory_space<vmem>>, vector<1x16x16xf32>
    %39 = vector.shape_cast %38 : vector<1x16x16xf32> to vector<16x16xf32>
    %40 = vector.shape_cast %39 : vector<16x16xf32> to vector<1x16x16xf32>
    %41 = vector.broadcast %40 : vector<1x16x16xf32> to vector<4x16x16xf32>
    %42 = arith.addf %37, %41 : vector<4x16x16xf32>
    %cst_17 = arith.constant dense<0xFF800000> : vector<4x16xf32>
    %43 = vector.multi_reduction <maximumf>, %42, %cst_17 [2] : vector<4x16x16xf32> to vector<4x16xf32>
    %44 = vector.shape_cast %43 : vector<4x16xf32> to vector<4x16x1xf32>
    %45 = vector.broadcast %44 : vector<4x16x1xf32> to vector<4x16x16xf32>
    %46 = arith.subf %42, %45 : vector<4x16x16xf32>
    %47 = math.exp %46 : vector<4x16x16xf32>
    %cst_18 = arith.constant dense<0.000000e+00> : vector<4x16xf32>
    %48 = vector.multi_reduction <add>, %47, %cst_18 [2] : vector<4x16x16xf32> to vector<4x16xf32>
    %49 = vector.shape_cast %48 : vector<4x16xf32> to vector<4x16x1xf32>
    %50 = tpu.reciprocal %49 {approx = true} : vector<4x16x1xf32> -> vector<4x16x1xf32>
    %51 = vector.broadcast %50 : vector<4x16x1xf32> to vector<4x16x16xf32>
    %52 = arith.mulf %47, %51 : vector<4x16x16xf32>
    %53 = arith.truncf %52 : vector<4x16x16xf32> to vector<4x16x16xbf16>
    "tpu.trace_start"() <{level = 10 : i32, message = "gnm,gmd->gnd"}> : () -> ()
    %cst_19 = arith.constant dense<0.000000e+00> : vector<4x16x8xf32>
    %54 = tpu.matmul %53, %36, %cst_19 {dimension_numbers = #tpu.dot_dimension_numbers<[2], [1], [1], [2], [0, 0, 0, 1, 1, 2], [0], [0]>} : vector<4x16x16xbf16>, vector<4x16x8xbf16>, vector<4x16x8xf32> -> vector<4x16x8xf32>
    "tpu.trace_stop"() : () -> ()
    %55 = vector.shape_cast %54 : vector<4x16x8xf32> to vector<64x8xf32>
    %56 = arith.truncf %55 : vector<64x8xf32> to vector<64x8xbf16>
    %c0_20 = arith.constant 0 : index
    %c8 = arith.constant 8 : index
    %57 = vector.load %arg8[%c0_20, %c8] : memref<64x32xbf16, #tpu.memory_space<vmem>>, vector<64x8xbf16>
    tpu.vector_store %arg8[%c0_20, %c8], %56 {strides = array<i32>} : memref<64x32xbf16, #tpu.memory_space<vmem>>, vector<64x8xbf16>,
    %58 = vector.extract_strided_slice %9 {offsets = [0, 0, 16], sizes = [4, 16, 8], strides = [1, 1, 1]} : vector<4x16x96xbf16> to vector<4x16x8xbf16>
    %59 = vector.extract_strided_slice %9 {offsets = [0, 0, 48], sizes = [4, 16, 8], strides = [1, 1, 1]} : vector<4x16x96xbf16> to vector<4x16x8xbf16>
    %60 = vector.extract_strided_slice %9 {offsets = [0, 0, 80], sizes = [4, 16, 8], strides = [1, 1, 1]} : vector<4x16x96xbf16> to vector<4x16x8xbf16>
    "tpu.trace_start"() <{level = 10 : i32, message = "gnd,gmd->gnm"}> : () -> ()
    %cst_21 = arith.constant dense<0.000000e+00> : vector<4x16x16xf32>
    %61 = tpu.matmul %58, %59, %cst_21 {dimension_numbers = #tpu.dot_dimension_numbers<[2], [2], [1], [1], [0, 0, 0, 1, 1, 1], [0], [0]>} : vector<4x16x8xbf16>, vector<4x16x8xbf16>, vector<4x16x16xf32> -> vector<4x16x16xf32>
    "tpu.trace_stop"() : () -> ()
    %c2 = arith.constant 2 : index
    %c0_22 = arith.constant 0 : index
    %c0_23 = arith.constant 0 : index
    %62 = vector.load %arg6[%c2, %c0_22, %c0_23] : memref<4x16x16xf32, #tpu.memory_space<vmem>>, vector<1x16x16xf32>
    %63 = vector.shape_cast %62 : vector<1x16x16xf32> to vector<16x16xf32>
    %64 = vector.shape_cast %63 : vector<16x16xf32> to vector<1x16x16xf32>
    %65 = vector.broadcast %64 : vector<1x16x16xf32> to vector<4x16x16xf32>
    %66 = arith.addf %61, %65 : vector<4x16x16xf32>
    %cst_24 = arith.constant dense<0xFF800000> : vector<4x16xf32>
    %67 = vector.multi_reduction <maximumf>, %66, %cst_24 [2] : vector<4x16x16xf32> to vector<4x16xf32>
    %68 = vector.shape_cast %67 : vector<4x16xf32> to vector<4x16x1xf32>
    %69 = vector.broadcast %68 : vector<4x16x1xf32> to vector<4x16x16xf32>
    %70 = arith.subf %66, %69 : vector<4x16x16xf32>
    %71 = math.exp %70 : vector<4x16x16xf32>
    %cst_25 = arith.constant dense<0.000000e+00> : vector<4x16xf32>
    %72 = vector.multi_reduction <add>, %71, %cst_25 [2] : vector<4x16x16xf32> to vector<4x16xf32>
    %73 = vector.shape_cast %72 : vector<4x16xf32> to vector<4x16x1xf32>
    %74 = tpu.reciprocal %73 {approx = true} : vector<4x16x1xf32> -> vector<4x16x1xf32>
    %75 = vector.broadcast %74 : vector<4x16x1xf32> to vector<4x16x16xf32>
    %76 = arith.mulf %71, %75 : vector<4x16x16xf32>
    %77 = arith.truncf %76 : vector<4x16x16xf32> to vector<4x16x16xbf16>
    "tpu.trace_start"() <{level = 10 : i32, message = "gnm,gmd->gnd"}> : () -> ()
    %cst_26 = arith.constant dense<0.000000e+00> : vector<4x16x8xf32>
    %78 = tpu.matmul %77, %60, %cst_26 {dimension_numbers = #tpu.dot_dimension_numbers<[2], [1], [1], [2], [0, 0, 0, 1, 1, 2], [0], [0]>} : vector<4x16x16xbf16>, vector<4x16x8xbf16>, vector<4x16x8xf32> -> vector<4x16x8xf32>
    "tpu.trace_stop"() : () -> ()
    %79 = vector.shape_cast %78 : vector<4x16x8xf32> to vector<64x8xf32>
    %80 = arith.truncf %79 : vector<64x8xf32> to vector<64x8xbf16>
    %c0_27 = arith.constant 0 : index
    %c16 = arith.constant 16 : index
    %81 = vector.load %arg8[%c0_27, %c16] : memref<64x32xbf16, #tpu.memory_space<vmem>>, vector<64x8xbf16>
    tpu.vector_store %arg8[%c0_27, %c16], %80 {strides = array<i32>} : memref<64x32xbf16, #tpu.memory_space<vmem>>, vector<64x8xbf16>,
    %82 = vector.extract_strided_slice %9 {offsets = [0, 0, 24], sizes = [4, 16, 8], strides = [1, 1, 1]} : vector<4x16x96xbf16> to vector<4x16x8xbf16>
    %83 = vector.extract_strided_slice %9 {offsets = [0, 0, 56], sizes = [4, 16, 8], strides = [1, 1, 1]} : vector<4x16x96xbf16> to vector<4x16x8xbf16>
    %84 = vector.extract_strided_slice %9 {offsets = [0, 0, 88], sizes = [4, 16, 8], strides = [1, 1, 1]} : vector<4x16x96xbf16> to vector<4x16x8xbf16>
    "tpu.trace_start"() <{level = 10 : i32, message = "gnd,gmd->gnm"}> : () -> ()
    %cst_28 = arith.constant dense<0.000000e+00> : vector<4x16x16xf32>
    %85 = tpu.matmul %82, %83, %cst_28 {dimension_numbers = #tpu.dot_dimension_numbers<[2], [2], [1], [1], [0, 0, 0, 1, 1, 1], [0], [0]>} : vector<4x16x8xbf16>, vector<4x16x8xbf16>, vector<4x16x16xf32> -> vector<4x16x16xf32>
    "tpu.trace_stop"() : () -> ()
    %c3 = arith.constant 3 : index
    %c0_29 = arith.constant 0 : index
    %c0_30 = arith.constant 0 : index
    %86 = vector.load %arg6[%c3, %c0_29, %c0_30] : memref<4x16x16xf32, #tpu.memory_space<vmem>>, vector<1x16x16xf32>
    %87 = vector.shape_cast %86 : vector<1x16x16xf32> to vector<16x16xf32>
    %88 = vector.shape_cast %87 : vector<16x16xf32> to vector<1x16x16xf32>
    %89 = vector.broadcast %88 : vector<1x16x16xf32> to vector<4x16x16xf32>
    %90 = arith.addf %85, %89 : vector<4x16x16xf32>
    %cst_31 = arith.constant dense<0xFF800000> : vector<4x16xf32>
    %91 = vector.multi_reduction <maximumf>, %90, %cst_31 [2] : vector<4x16x16xf32> to vector<4x16xf32>
    %92 = vector.shape_cast %91 : vector<4x16xf32> to vector<4x16x1xf32>
    %93 = vector.broadcast %92 : vector<4x16x1xf32> to vector<4x16x16xf32>
    %94 = arith.subf %90, %93 : vector<4x16x16xf32>
    %95 = math.exp %94 : vector<4x16x16xf32>
    %cst_32 = arith.constant dense<0.000000e+00> : vector<4x16xf32>
    %96 = vector.multi_reduction <add>, %95, %cst_32 [2] : vector<4x16x16xf32> to vector<4x16xf32>
    %97 = vector.shape_cast %96 : vector<4x16xf32> to vector<4x16x1xf32>
    %98 = tpu.reciprocal %97 {approx = true} : vector<4x16x1xf32> -> vector<4x16x1xf32>
    %99 = vector.broadcast %98 : vector<4x16x1xf32> to vector<4x16x16xf32>
    %100 = arith.mulf %95, %99 : vector<4x16x16xf32>
    %101 = arith.truncf %100 : vector<4x16x16xf32> to vector<4x16x16xbf16>
    "tpu.trace_start"() <{level = 10 : i32, message = "gnm,gmd->gnd"}> : () -> ()
    %cst_33 = arith.constant dense<0.000000e+00> : vector<4x16x8xf32>
    %102 = tpu.matmul %101, %84, %cst_33 {dimension_numbers = #tpu.dot_dimension_numbers<[2], [1], [1], [2], [0, 0, 0, 1, 1, 2], [0], [0]>} : vector<4x16x16xbf16>, vector<4x16x8xbf16>, vector<4x16x8xf32> -> vector<4x16x8xf32>
    "tpu.trace_stop"() : () -> ()
    %103 = vector.shape_cast %102 : vector<4x16x8xf32> to vector<64x8xf32>
    %104 = arith.truncf %103 : vector<64x8xf32> to vector<64x8xbf16>
    %c0_34 = arith.constant 0 : index
    %c24 = arith.constant 24 : index
    %105 = vector.load %arg8[%c0_34, %c24] : memref<64x32xbf16, #tpu.memory_space<vmem>>, vector<64x8xbf16>
    tpu.vector_store %arg8[%c0_34, %c24], %104 {strides = array<i32>} : memref<64x32xbf16, #tpu.memory_space<vmem>>, vector<64x8xbf16>,
    %c0_35 = arith.constant 0 : index
    %c0_36 = arith.constant 0 : index
    %106 = vector.load %arg8[%c0_35, %c0_36] : memref<64x32xbf16, #tpu.memory_space<vmem>>, vector<64x32xbf16>
    %c0_37 = arith.constant 0 : index
    %c0_38 = arith.constant 0 : index
    %107 = vector.load %arg4[%c0_37, %c0_38] : memref<32x32xbf16, #tpu.memory_space<vmem>>, vector<32x32xbf16>
    %cst_39 = arith.constant dense<0.000000e+00> : vector<64x32xf32>
    %108 = tpu.matmul %106, %107, %cst_39 {dimension_numbers = #tpu.dot_dimension_numbers<[1], [0], [0], [1], [0, 0, 1, 1], [], []>} : vector<64x32xbf16>, vector<32x32xbf16>, vector<64x32xf32> -> vector<64x32xf32>
    %c0_40 = arith.constant 0 : index
    %c0_41 = arith.constant 0 : index
    %109 = vector.load %arg5[%c0_40, %c0_41] : memref<1x32xf32, #tpu.memory_space<vmem>>, vector<1x32xf32>
    %110 = vector.shape_cast %109 : vector<1x32xf32> to vector<32xf32>
    %111 = vector.shape_cast %110 : vector<32xf32> to vector<1x32xf32>
    %112 = vector.broadcast %111 : vector<1x32xf32> to vector<64x32xf32>
    %113 = arith.addf %108, %112 : vector<64x32xf32>
    %114 = arith.truncf %113 : vector<64x32xf32> to vector<64x32xbf16>
    %c0_42 = arith.constant 0 : index
    %c0_43 = arith.constant 0 : index
    %115 = vector.load %arg7[%c0_42, %c0_43] : memref<64x32xbf16, #tpu.memory_space<vmem>>, vector<64x32xbf16>
    tpu.vector_store %arg7[%c0_42, %c0_43], %114 {strides = array<i32>} : memref<64x32xbf16, #tpu.memory_space<vmem>>, vector<64x32xbf16>,
    return
  }
  func.func @transform_0(%arg0: i32) -> (i32, i32) {
    %c0_i32 = arith.constant 0 : i32
    %c0_i32_0 = arith.constant 0 : i32
    return %arg0, %c0_i32 : i32, i32
  }
  func.func @transform_1(%arg0: i32) -> (i32, i32) {
    %c0_i32 = arith.constant 0 : i32
    %c0_i32_0 = arith.constant 0 : i32
    %c0_i32_1 = arith.constant 0 : i32
    return %c0_i32, %c0_i32_0 : i32, i32
  }
  func.func @transform_2(%arg0: i32) -> (i32, i32) {
    %c0_i32 = arith.constant 0 : i32
    %c0_i32_0 = arith.constant 0 : i32
    %c0_i32_1 = arith.constant 0 : i32
    return %c0_i32, %c0_i32_0 : i32, i32
  }
  func.func @transform_3(%arg0: i32) -> (i32, i32) {
    %c0_i32 = arith.constant 0 : i32
    %c0_i32_0 = arith.constant 0 : i32
    %c0_i32_1 = arith.constant 0 : i32
    return %c0_i32, %c0_i32_0 : i32, i32
  }
  func.func @transform_4(%arg0: i32) -> (i32, i32) {
    %c0_i32 = arith.constant 0 : i32
    %c0_i32_0 = arith.constant 0 : i32
    %c0_i32_1 = arith.constant 0 : i32
    return %c0_i32, %c0_i32_0 : i32, i32
  }
  func.func @transform_5(%arg0: i32) -> (i32, i32, i32) {
    %c0_i32 = arith.constant 0 : i32
    %c0_i32_0 = arith.constant 0 : i32
    %c0_i32_1 = arith.constant 0 : i32
    %c0_i32_2 = arith.constant 0 : i32
    return %c0_i32, %c0_i32_0, %c0_i32_1 : i32, i32, i32
  }
  func.func @transform_6(%arg0: i32) -> (i32, i32) {
    %c0_i32 = arith.constant 0 : i32
    %c0_i32_0 = arith.constant 0 : i32
    return %arg0, %c0_i32 : i32, i32
  }
}

</mosaic_0001>

<llo_original>
// kernel: tpu_custom_call.1
$region0: #{tpu_custom_call.1}
  #allocation0 [shape = 'u32[]', space=smem, size = 0x4, offset = 0x4, fixed_abs, tag = 'smem constant byte address 0x4 - core index']
  #allocation1 [shape = 'u32[144,128]{1,0:T(1,128)}', space=vmem, size = 0x12000, scoped, tag = 'internal scratch']
  #allocation2 [shape = 'bf16[64,32]{1,0:T(16,128)(2,1)}', space=vmem, size = 0x4000, scoped, tag = 'scratch operand']
  %s0 = inlined_call_operand.vmem [shape: bf16[256,32], index: 0, kind: input, shape index: {}]
  %s1 = inlined_call_operand.vmem [shape: bf16[32,96], index: 1, kind: input, shape index: {}]
  %s2 = inlined_call_operand.vmem [shape: f32[1,96], index: 2, kind: input, shape index: {}]
  %s3 = inlined_call_operand.vmem [shape: bf16[32,32], index: 3, kind: input, shape index: {}]
  %s4 = inlined_call_operand.vmem [shape: f32[1,32], index: 4, kind: input, shape index: {}]
  %s5 = inlined_call_operand.vmem [shape: f32[4,16,16], index: 5, kind: input, shape index: {}]
  %s6 = inlined_call_operand.vmem [shape: bf16[256,32], index: 6, kind: output, shape index: {}]
  %s7 = sld [smem:[#allocation0]]
  $region57: #{tpu_custom_call.1} parent=0
    _
  %s9 = ssub.s32 1, %s7
  %s10 = scalar_select 0, %s9, %s7
  loop: start=0, step=1, limit=6
  $region2: #{tpu_custom_call.1} parent=0 // loop_pre_header
    _
  $region3: #{tpu_custom_call.1} parent=0 // loop_header
    %s12 = sphi 0, %s16
    %p13 = scmp.ge.s32.totalorder %s12, 6
    %s22 = sphi 0, %s24
    %s25 = sphi 0, %s22
    %s26 = sphi 0, %s25
    %s42 = sphi 0, %s26
    %s46 = sphi 0, %s46
    %s48 = sphi 0, %s46
    %s49 = sphi 0, %s48
    %s63 = sphi 0, %s49
    %s67 = sphi 0, %s67
    %s69 = sphi 0, %s67
    %s70 = sphi 0, %s69
    %s84 = sphi 0, %s70
    %s88 = sphi 0, %s88
    %s90 = sphi 0, %s88
    %s91 = sphi 0, %s90
    %s105 = sphi 0, %s91
    %s109 = sphi 0, %s109
    %s111 = sphi 0, %s109
    %s112 = sphi 0, %s111
    %s126 = sphi 0, %s112
    %s130 = sphi 0, %s130
    %s132 = sphi 0, %s130
    %s133 = sphi 0, %s132
    %s147 = sphi 0, %s133
    %s153 = sphi 0, %s155
    %s156 = sphi 0, %s153
    %s157 = sphi 0, %s156
    %s173 = sphi 0, %s157
  $region4: #{tpu_custom_call.1} parent=0 // loop_header_branch
    %15 = sbr.rel (%p13) target = $region8
  $region5: #{tpu_custom_call.1} parent=0 // loop_body
    %s17 = ssub.s32 %s12, 1
    %s18 = ssub.s32 %s12, 2
    %s19 = sadd.s32 %s12, 1
    %s20 = ssub.s32 %s12, %s19
    %p21 = scmp.eq.s32.totalorder %s20, 0
    %s23 = sadd.s32 %s22, 1
    %s24 = scalar_select %p21, %s22, %s23
    %p27 = pneg %p21
    %p28 = scmp.eq.s32.totalorder %s12, 3
    %p29 = por %p27, %p28
    %p30 = scmp.ne.s32.totalorder %s22, %s25
    %p31 = scmp.eq.s32.totalorder %s12, 0
    %p32 = por %p30, %p31
    %p33 = scmp.ne.s32.totalorder %s22, %s25
    %p34 = scmp.eq.s32.totalorder %s17, 3
    %p35 = por %p33, %p34
    %p36 = scmp.ne.s32.totalorder %s25, %s26
    %p37 = scmp.eq.s32.totalorder %s17, 0
    %p38 = por %p36, %p37
    %p39 = scmp.ne.s32.totalorder %s25, %s26
    %p40 = scmp.eq.s32.totalorder %s18, 3
    %p41 = por %p39, %p40
    %p43 = scmp.ne.s32.totalorder %s26, %s42
    %p44 = scmp.eq.s32.totalorder %s18, 0
    %p45 = por %p43, %p44
    %s47 = sadd.s32 %s46, 1
    %p50 = scmp.eq.s32.totalorder %s12, 3
    %p51 = scmp.ne.s32.totalorder %s46, %s48
    %p52 = scmp.eq.s32.totalorder %s12, 0
    %p53 = por %p51, %p52
    %p54 = scmp.ne.s32.totalorder %s46, %s48
    %p55 = scmp.eq.s32.totalorder %s17, 3
    %p56 = por %p54, %p55
    %p57 = scmp.ne.s32.totalorder %s48, %s49
    %p58 = scmp.eq.s32.totalorder %s17, 0
    %p59 = por %p57, %p58
    %p60 = scmp.ne.s32.totalorder %s48, %s49
    %p61 = scmp.eq.s32.totalorder %s18, 3
    %p62 = por %p60, %p61
    %p64 = scmp.ne.s32.totalorder %s49, %s63
    %p65 = scmp.eq.s32.totalorder %s18, 0
    %p66 = por %p64, %p65
    %s68 = sadd.s32 %s67, 1
    %p71 = scmp.eq.s32.totalorder %s12, 3
    %p72 = scmp.ne.s32.totalorder %s67, %s69
    %p73 = scmp.eq.s32.totalorder %s12, 0
    %p74 = por %p72, %p73
    %p75 = scmp.ne.s32.totalorder %s67, %s69
    %p76 = scmp.eq.s32.totalorder %s17, 3
    %p77 = por %p75, %p76
    %p78 = scmp.ne.s32.totalorder %s69, %s70
    %p79 = scmp.eq.s32.totalorder %s17, 0
    %p80 = por %p78, %p79
    %p81 = scmp.ne.s32.totalorder %s69, %s70
    %p82 = scmp.eq.s32.totalorder %s18, 3
    %p83 = por %p81, %p82
    %p85 = scmp.ne.s32.totalorder %s70, %s84
    %p86 = scmp.eq.s32.totalorder %s18, 0
    %p87 = por %p85, %p86
    %s89 = sadd.s32 %s88, 1
    %p92 = scmp.eq.s32.totalorder %s12, 3
    %p93 = scmp.ne.s32.totalorder %s88, %s90
    %p94 = scmp.eq.s32.totalorder %s12, 0
    %p95 = por %p93, %p94
    %p96 = scmp.ne.s32.totalorder %s88, %s90
    %p97 = scmp.eq.s32.totalorder %s17, 3
    %p98 = por %p96, %p97
    %p99 = scmp.ne.s32.totalorder %s90, %s91
    %p100 = scmp.eq.s32.totalorder %s17, 0
    %p101 = por %p99, %p100
    %p102 = scmp.ne.s32.totalorder %s90, %s91
    %p103 = scmp.eq.s32.totalorder %s18, 3
    %p104 = por %p102, %p103
    %p106 = scmp.ne.s32.totalorder %s91, %s105
    %p107 = scmp.eq.s32.totalorder %s18, 0
    %p108 = por %p106, %p107
    %s110 = sadd.s32 %s109, 1
    %p113 = scmp.eq.s32.totalorder %s12, 3
    %p114 = scmp.ne.s32.totalorder %s109, %s111
    %p115 = scmp.eq.s32.totalorder %s12, 0
    %p116 = por %p114, %p115
    %p117 = scmp.ne.s32.totalorder %s109, %s111
    %p118 = scmp.eq.s32.totalorder %s17, 3
    %p119 = por %p117, %p118
    %p120 = scmp.ne.s32.totalorder %s111, %s112
    %p121 = scmp.eq.s32.totalorder %s17, 0
    %p122 = por %p120, %p121
    %p123 = scmp.ne.s32.totalorder %s111, %s112
    %p124 = scmp.eq.s32.totalorder %s18, 3
    %p125 = por %p123, %p124
    %p127 = scmp.ne.s32.totalorder %s112, %s126
    %p128 = scmp.eq.s32.totalorder %s18, 0
    %p129 = por %p127, %p128
    %s131 = sadd.s32 %s130, 1
    %p134 = scmp.eq.s32.totalorder %s12, 3
    %p135 = scmp.ne.s32.totalorder %s130, %s132
    %p136 = scmp.eq.s32.totalorder %s12, 0
    %p137 = por %p135, %p136
    %p138 = scmp.ne.s32.totalorder %s130, %s132
    %p139 = scmp.eq.s32.totalorder %s17, 3
    %p140 = por %p138, %p139
    %p141 = scmp.ne.s32.totalorder %s132, %s133
    %p142 = scmp.eq.s32.totalorder %s17, 0
    %p143 = por %p141, %p142
    %p144 = scmp.ne.s32.totalorder %s132, %s133
    %p145 = scmp.eq.s32.totalorder %s18, 3
    %p146 = por %p144, %p145
    %p148 = scmp.ne.s32.totalorder %s133, %s147
    %p149 = scmp.eq.s32.totalorder %s18, 0
    %p150 = por %p148, %p149
    %s151 = ssub.s32 %s12, %s19
    %p152 = scmp.eq.s32.totalorder %s151, 0
    %s154 = sadd.s32 %s153, 1
    %s155 = scalar_select %p152, %s153, %s154
    %p158 = pneg %p152
    %p159 = scmp.eq.s32.totalorder %s12, 3
    %p160 = por %p158, %p159
    %p161 = scmp.ne.s32.totalorder %s153, %s156
    %p162 = scmp.eq.s32.totalorder %s12, 0
    %p163 = por %p161, %p162
    %p164 = scmp.ne.s32.totalorder %s153, %s156
    %p165 = scmp.eq.s32.totalorder %s17, 3
    %p166 = por %p164, %p165
    %p167 = scmp.ne.s32.totalorder %s156, %s157
    %p168 = scmp.eq.s32.totalorder %s17, 0
    %p169 = por %p167, %p168
    %p170 = scmp.ne.s32.totalorder %s156, %s157
    %p171 = scmp.eq.s32.totalorder %s18, 3
    %p172 = por %p170, %p171
    %p174 = scmp.ne.s32.totalorder %s157, %s173
    %p175 = scmp.eq.s32.totalorder %s18, 0
    %p176 = por %p174, %p175
    %p177 = scmp.le.s32.totalorder 1, %s12
    %p178 = scmp.lt.s32.totalorder %s12, 5
    %p179 = pnand %p177, %p178
    %p180 = pneg %p179
    // Predicated region
    $region9: #{tpu_custom_call.1} parent=5 // pred_check
      _
    $region10: #{tpu_custom_call.1} parent=5 // pred_check_branch
      %182 = sbr.rel (%p179) target = $region12
    $region11: #{tpu_custom_call.1} parent=5 // pred_region
      %s183 = ssub.s32 %s12, 1
      // Predicated region
      $region13: #{tpu_custom_call.1} parent=11 // pred_check
        %p184 = pneg %p59
      $region14: #{tpu_custom_call.1} parent=11 // pred_check_branch
        %186 = sbr.rel (%p184) target = $region16
      $region15: #{tpu_custom_call.1} parent=11 // pred_region
        _
      $region16: #{tpu_custom_call.1} parent=11 // pred_fallthru
        _
      // Predicated region
      $region17: #{tpu_custom_call.1} parent=11 // pred_check
        %p187 = pneg %p80
      $region18: #{tpu_custom_call.1} parent=11 // pred_check_branch
        %189 = sbr.rel (%p187) target = $region20
      $region19: #{tpu_custom_call.1} parent=11 // pred_region
        _
      $region20: #{tpu_custom_call.1} parent=11 // pred_fallthru
        _
      // Predicated region
      $region21: #{tpu_custom_call.1} parent=11 // pred_check
        %p190 = pneg %p101
      $region22: #{tpu_custom_call.1} parent=11 // pred_check_branch
        %192 = sbr.rel (%p190) target = $region24
      $region23: #{tpu_custom_call.1} parent=11 // pred_region
        _
      $region24: #{tpu_custom_call.1} parent=11 // pred_fallthru
        _
      // Predicated region
      $region25: #{tpu_custom_call.1} parent=11 // pred_check
        %p193 = pneg %p122
      $region26: #{tpu_custom_call.1} parent=11 // pred_check_branch
        %195 = sbr.rel (%p193) target = $region28
      $region27: #{tpu_custom_call.1} parent=11 // pred_region
        _
      $region28: #{tpu_custom_call.1} parent=11 // pred_fallthru
        _
      // Predicated region
      $region29: #{tpu_custom_call.1} parent=11 // pred_check
        %p196 = pneg %p143
      $region30: #{tpu_custom_call.1} parent=11 // pred_check_branch
        %198 = sbr.rel (%p196) target = $region32
      $region31: #{tpu_custom_call.1} parent=11 // pred_region
        _
      $region32: #{tpu_custom_call.1} parent=11 // pred_fallthru
        _
    $region12: #{tpu_custom_call.1} parent=5 // pred_fallthru
      _
    %p199 = scmp.lt.s32.totalorder %s12, 4
    // Predicated region
    $region33: #{tpu_custom_call.1} parent=5 // pred_check
      %p200 = pneg %p199
    $region34: #{tpu_custom_call.1} parent=5 // pred_check_branch
      %202 = sbr.rel (%p200) target = $region36
    $region35: #{tpu_custom_call.1} parent=5 // pred_region
      // Predicated region
      $region37: #{tpu_custom_call.1} parent=35 // pred_check
        %p203 = pneg %p32
      $region38: #{tpu_custom_call.1} parent=35 // pred_check_branch
        %205 = sbr.rel (%p203) target = $region40
      $region39: #{tpu_custom_call.1} parent=35 // pred_region
        %s206 = smul.u32 8, %s12
        %p207 = scmp.lt.s32.totalorder %s206, 31
        %s208 = scalar_select %p207, %s206, 31
        %s209 = smul.addr %s208, 4
        %s210 = scalar_lea.vmem %s0, %s209
        %s211 = smul.u32 8, %s12
      $region40: #{tpu_custom_call.1} parent=35 // pred_fallthru
        _
    $region36: #{tpu_custom_call.1} parent=5 // pred_fallthru
      _
    %p212 = scmp.le.s32.totalorder 1, %s12
    %p213 = scmp.lt.s32.totalorder %s12, 5
    %p214 = pnand %p212, %p213
    %p215 = pneg %p214
    // Predicated region
    $region41: #{tpu_custom_call.1} parent=5 // pred_check
      _
    $region42: #{tpu_custom_call.1} parent=5 // pred_check_branch
      %217 = sbr.rel (%p214) target = $region44
    $region43: #{tpu_custom_call.1} parent=5 // pred_region
      %s218 = ssub.s32 %s12, 1
      %s219 = smul.u32 8, %s17
      %p220 = scmp.lt.s32.totalorder %s219, 31
      %s221 = scalar_select %p220, %s219, 31
      %s222 = smul.addr %s221, 4
      %s223 = scalar_lea.vmem %s0, %s222
      %p224 = pneg %p38
      %p225 = pneg %p35
      %p226 = pneg %p59
      %p227 = pneg %p56
      %p228 = pneg %p80
      %p229 = pneg %p77
      %p230 = pneg %p101
      %p231 = pneg %p98
      %p232 = pneg %p122
      %p233 = pneg %p119
      %p234 = pneg %p143
      %p235 = pneg %p140
      %p236 = pneg %p169
      %p237 = pneg %p166
      %s238 = smul.u32 8, %s17
      %p239 = scmp.lt.s32.totalorder %s238, 31
      %s240 = scalar_select %p239, %s238, 31
      %s241 = smul.addr %s240, 4
      %s242 = scalar_lea.vmem %s6, %s241
      %s243 = smul.u32 8, %s17
      %p244 = scmp.lt.s32.totalorder %s243, 31
      %s245 = scalar_select %p244, %s243, 31
      %s246 = smul.addr %s245, 4
      %s247 = scalar_lea.vmem %s0, %s246
      %s248 = smul.u32 8, %s17
      %s249 = smul.u32 8, %s17
      %p250 = scmp.lt.s32.totalorder %s249, 31
      %s251 = scalar_select %p250, %s249, 31
      %s252 = smul.addr %s251, 4
      %s253 = scalar_lea.vmem %s6, %s252
      %s254 = smul.u32 8, %s17
      %v256 = vld [vmem:[%s247] sm:$0xf]
      %v257 = vld [vmem:[%s247 + $0x4] sm:$0xf]
      %v258 = vld [vmem:[%s247 + $0x8] sm:$0xf]
      %v259 = vld [vmem:[%s247 + $0xc] sm:$0xf]
      %v260 = vld [vmem:[%s247 + $0x10] sm:$0xf]
      %v261 = vld [vmem:[%s247 + $0x14] sm:$0xf]
      %v262 = vld [vmem:[%s247 + $0x18] sm:$0xf]
      %v263 = vld [vmem:[%s247 + $0x1c] sm:$0xf]
      %v264 = vld [vmem:[%s1] sm:$0xf]
      %v265 = vld [vmem:[%s1 + $0x4] sm:$0xf]
      %v266 = vld [vmem:[%s1 + $0x8] sm:$0xf]
      %v267 = vld [vmem:[%s1 + $0xc] sm:$0xf]
      %v268 = vld [vmem:[%s2] sm:$0x1]
      %v270 = vlaneseq
      %v271 = vshrl.u32 %v270, 7
      %v272 = vsub.s32 0, %v271
      %v273 = vrot.slane %v268, %v272
      %v283 = vunpack.c.l.b16 %v256
      %v284 = vunpack.c.l.b16 %v257
      %v285 = vunpack.c.l.b16 %v258
      %v286 = vunpack.c.l.b16 %v259
      %v287 = vunpack.c.l.b16 %v260
      %v288 = vunpack.c.l.b16 %v261
      %v289 = vunpack.c.l.b16 %v262
      %v290 = vunpack.c.l.b16 %v263
      %v291 = vpack.c.b16 %v284, %v283
      %v292 = vpack.c.b16 %v286, %v285
      %v293 = vpack.c.b16 %v288, %v287
      %v294 = vpack.c.b16 %v290, %v289
      %v299 = vunpack.c.l.b16 %v264
      %v300 = vunpack.c.l.b16 %v265
      %v301 = vunpack.c.l.b16 %v266
      %v302 = vunpack.c.l.b16 %v267
      %v303 = vpack.c.b16 %v300, %v299
      %v304 = vpack.c.b16 %v302, %v301
      %vm307 = vcmask 261120
      %v309 = vsel %vm307, %v291, 0
      %v312 = vsel %vm307, %v292, 0
      %v315 = vsel %vm307, %v293, 0
      %v318 = vsel %vm307, %v294, 0
      %320 = vmatprep.subr.bf16.mxu0 0
      %321 = vmatpush1.bf16.msra.mxu0 %v303
      %322 = vmatprep.subr.bf16.mxu0 0
      %323 = vmatpush1.bf16.msra.mxu0 %v304
      %324 = vmatprep.subr.bf16.mxu0 0
      %325 = vmatpush1.bf16.msra.mxu0 0
      %326 = vmatprep.subr.bf16.mxu0 0
      %327 = vmatpush1.bf16.msra.mxu0 0
      %328 = vmatprep.subr.bf16.mxu0 0
      %329 = vmatpush1.bf16.msra.mxu0 0
      %330 = vmatprep.subr.bf16.mxu0 0
      %331 = vmatpush1.bf16.msra.mxu0 0
      %332 = vmatprep.subr.bf16.mxu0 0
      %333 = vmatpush1.bf16.msra.mxu0 0
      %334 = vmatprep.subr.bf16.mxu0 0
      %335 = vmatpush1.bf16.msra.mxu0 0
      %336 = vmatprep.subr.bf16.mxu0 0
      %337 = vmatpush1.bf16.msra.mxu0 0
      %338 = vmatprep.subr.bf16.mxu0 0
      %339 = vmatpush1.bf16.msra.mxu0 0
      %340 = vmatprep.subr.bf16.mxu0 0
      %341 = vmatpush1.bf16.msra.mxu0 0
      %342 = vmatprep.subr.bf16.mxu0 0
      %343 = vmatpush1.bf16.msra.mxu0 0
      %344 = vmatprep.subr.bf16.mxu0 0
      %345 = vmatpush1.bf16.msra.mxu0 0
      %346 = vmatprep.subr.bf16.mxu0 0
      %347 = vmatpush1.bf16.msra.mxu0 0
      %348 = vmatprep.subr.bf16.mxu0 0
      %349 = vmatpush1.bf16.msra.mxu0 0
      %350 = vmatprep.subr.bf16.mxu0 0
      %351 = vmatpush1.bf16.msra.mxu0 0
      %352 = vmatprep.mubr.bf16.mxu0 0
      %353 = vmatmul.mubr.bf16.gmra.mrb[0].mxu0 %v309
      %v354 = vpop.f32.mrb[0].mxu0
      %v355 = vadd.f32 %v273, %v354
      %v356 = vpop.f32.mrb[0].mxu0
      %v357 = vpop.f32.mrb[0].mxu0
      %v358 = vadd.f32 %v273, %v357
      %v359 = vpop.f32.mrb[0].mxu0
      %360 = vmatprep.mubr.bf16.mxu0 0
      %361 = vmatmul.mubr.bf16.gmra.mrb[0].mxu0 %v312
      %v362 = vpop.f32.mrb[0].mxu0
      %v363 = vadd.f32 %v273, %v362
      %v364 = vpop.f32.mrb[0].mxu0
      %v365 = vpop.f32.mrb[0].mxu0
      %v366 = vadd.f32 %v273, %v365
      %v367 = vpop.f32.mrb[0].mxu0
      %368 = vmatprep.mubr.bf16.mxu0 0
      %369 = vmatmul.mubr.bf16.gmra.mrb[0].mxu0 %v315
      %v370 = vpop.f32.mrb[0].mxu0
      %v371 = vadd.f32 %v273, %v370
      %v372 = vpop.f32.mrb[0].mxu0
      %v373 = vpop.f32.mrb[0].mxu0
      %v374 = vadd.f32 %v273, %v373
      %v375 = vpop.f32.mrb[0].mxu0
      %376 = vmatprep.mubr.bf16.mxu0 0
      %377 = vmatmul.mubr.bf16.gmra.mrb[0].mxu0 %v318
      %v378 = vpop.f32.mrb[0].mxu0
      %v379 = vadd.f32 %v273, %v378
      %v380 = vpop.f32.mrb[0].mxu0
      %v381 = vpop.f32.mrb[0].mxu0
      %v382 = vadd.f32 %v273, %v381
      %v383 = vpop.f32.mrb[0].mxu0
      %384 = vdwg.mxu0
      %v385 = vpack.c.bf16 %v358, %v355
      %v386 = vpack.c.bf16 %v366, %v363
      %v387 = vpack.c.bf16 %v374, %v371
      %v388 = vpack.c.bf16 %v382, %v379
      %v389 = vld [vmem:[%s5] sm:$0xff]
      %v390 = vld [vmem:[%s5 + $0x8] sm:$0xff]
      %392 = vrot.lane.b32.xlu0 %v385, 96
      %v393 = vpop.permute.xlu0 %392
      %vm394 = vcmask 64512
      %v396 = vsel %vm394, %v385, 0
      %v399 = vsel %vm394, %v393, 0
      %401 = vmatprep.subr.bf16.mxu0 0
      %402 = vmatpush1.bf16.xpose.msra.mxu0 %v399
      %403 = vmatprep.subr.bf16.mxu0 0
      %404 = vmatpush1.bf16.xpose.msra.mxu0 0
      %405 = vmatprep.subr.bf16.mxu0 0
      %406 = vmatpush1.bf16.xpose.msra.mxu0 0
      %407 = vmatprep.subr.bf16.mxu0 0
      %408 = vmatpush1.bf16.xpose.msra.mxu0 0
      %409 = vmatprep.subr.bf16.mxu0 0
      %410 = vmatpush1.bf16.xpose.msra.mxu0 0
      %411 = vmatprep.subr.bf16.mxu0 0
      %412 = vmatpush1.bf16.xpose.msra.mxu0 0
      %413 = vmatprep.subr.bf16.mxu0 0
      %414 = vmatpush1.bf16.xpose.msra.mxu0 0
      %415 = vmatprep.subr.bf16.mxu0 0
      %416 = vmatpush1.bf16.xpose.msra.mxu0 0
      %417 = vmatprep.subr.bf16.mxu0 0
      %418 = vmatpush1.bf16.xpose.msra.mxu0 0
      %419 = vmatprep.subr.bf16.mxu0 0
      %420 = vmatpush1.bf16.xpose.msra.mxu0 0
      %421 = vmatprep.subr.bf16.mxu0 0
      %422 = vmatpush1.bf16.xpose.msra.mxu0 0
      %423 = vmatprep.subr.bf16.mxu0 0
      %424 = vmatpush1.bf16.xpose.msra.mxu0 0
      %425 = vmatprep.subr.bf16.mxu0 0
      %426 = vmatpush1.bf16.xpose.msra.mxu0 0
      %427 = vmatprep.subr.bf16.mxu0 0
      %428 = vmatpush1.bf16.xpose.msra.mxu0 0
      %429 = vmatprep.subr.bf16.mxu0 0
      %430 = vmatpush1.bf16.xpose.msra.mxu0 0
      %431 = vmatprep.subr.bf16.mxu0 0
      %432 = vmatpush1.bf16.xpose.msra.mxu0 0
      %433 = vmatprep.mubr.bf16.mxu0 0
      %434 = vmatmul.mubr.bf16.gmra.mrb[0].mxu0 %v396
      %v435 = vpop.f32.mrb[0].mxu0
      %v436 = vadd.f32 %v389, %v435
      %v437 = vpop.f32.mrb[0].mxu0
      %v438 = vpop.f32.mrb[0].mxu0
      %v439 = vadd.f32 %v390, %v438
      %v440 = vpop.f32.mrb[0].mxu0
      %441 = vdwg.mxu0
      %443 = vrot.lane.b32.xlu0 %v386, 96
      %v444 = vpop.permute.xlu0 %443
      %v446 = vsel %vm394, %v386, 0
      %v449 = vsel %vm394, %v444, 0
      %451 = vmatprep.subr.bf16.mxu0 0
      %452 = vmatpush1.bf16.xpose.msra.mxu0 %v449
      %453 = vmatprep.subr.bf16.mxu0 0
      %454 = vmatpush1.bf16.xpose.msra.mxu0 0
      %455 = vmatprep.subr.bf16.mxu0 0
      %456 = vmatpush1.bf16.xpose.msra.mxu0 0
      %457 = vmatprep.subr.bf16.mxu0 0
      %458 = vmatpush1.bf16.xpose.msra.mxu0 0
      %459 = vmatprep.subr.bf16.mxu0 0
      %460 = vmatpush1.bf16.xpose.msra.mxu0 0
      %461 = vmatprep.subr.bf16.mxu0 0
      %462 = vmatpush1.bf16.xpose.msra.mxu0 0
      %463 = vmatprep.subr.bf16.mxu0 0
      %464 = vmatpush1.bf16.xpose.msra.mxu0 0
      %465 = vmatprep.subr.bf16.mxu0 0
      %466 = vmatpush1.bf16.xpose.msra.mxu0 0
      %467 = vmatprep.subr.bf16.mxu0 0
      %468 = vmatpush1.bf16.xpose.msra.mxu0 0
      %469 = vmatprep.subr.bf16.mxu0 0
      %470 = vmatpush1.bf16.xpose.msra.mxu0 0
      %471 = vmatprep.subr.bf16.mxu0 0
      %472 = vmatpush1.bf16.xpose.msra.mxu0 0
      %473 = vmatprep.subr.bf16.mxu0 0
      %474 = vmatpush1.bf16.xpose.msra.mxu0 0
      %475 = vmatprep.subr.bf16.mxu0 0
      %476 = vmatpush1.bf16.xpose.msra.mxu0 0
      %477 = vmatprep.subr.bf16.mxu0 0
      %478 = vmatpush1.bf16.xpose.msra.mxu0 0
      %479 = vmatprep.subr.bf16.mxu0 0
      %480 = vmatpush1.bf16.xpose.msra.mxu0 0
      %481 = vmatprep.subr.bf16.mxu0 0
      %482 = vmatpush1.bf16.xpose.msra.mxu0 0
      %483 = vmatprep.mubr.bf16.mxu0 0
      %484 = vmatmul.mubr.bf16.gmra.mrb[0].mxu0 %v446
      %v485 = vpop.f32.mrb[0].mxu0
      %v486 = vadd.f32 %v389, %v485
      %v487 = vpop.f32.mrb[0].mxu0
      %v488 = vpop.f32.mrb[0].mxu0
      %v489 = vadd.f32 %v390, %v488
      %v490 = vpop.f32.mrb[0].mxu0
      %491 = vdwg.mxu0
      %493 = vrot.lane.b32.xlu0 %v387, 96
      %v494 = vpop.permute.xlu0 %493
      %v496 = vsel %vm394, %v387, 0
      %v499 = vsel %vm394, %v494, 0
      %501 = vmatprep.subr.bf16.mxu0 0
      %502 = vmatpush1.bf16.xpose.msra.mxu0 %v499
      %503 = vmatprep.subr.bf16.mxu0 0
      %504 = vmatpush1.bf16.xpose.msra.mxu0 0
      %505 = vmatprep.subr.bf16.mxu0 0
      %506 = vmatpush1.bf16.xpose.msra.mxu0 0
      %507 = vmatprep.subr.bf16.mxu0 0
      %508 = vmatpush1.bf16.xpose.msra.mxu0 0
      %509 = vmatprep.subr.bf16.mxu0 0
      %510 = vmatpush1.bf16.xpose.msra.mxu0 0
      %511 = vmatprep.subr.bf16.mxu0 0
      %512 = vmatpush1.bf16.xpose.msra.mxu0 0
      %513 = vmatprep.subr.bf16.mxu0 0
      %514 = vmatpush1.bf16.xpose.msra.mxu0 0
      %515 = vmatprep.subr.bf16.mxu0 0
      %516 = vmatpush1.bf16.xpose.msra.mxu0 0
      %517 = vmatprep.subr.bf16.mxu0 0
      %518 = vmatpush1.bf16.xpose.msra.mxu0 0
      %519 = vmatprep.subr.bf16.mxu0 0
      %520 = vmatpush1.bf16.xpose.msra.mxu0 0
      %521 = vmatprep.subr.bf16.mxu0 0
      %522 = vmatpush1.bf16.xpose.msra.mxu0 0
      %523 = vmatprep.subr.bf16.mxu0 0
      %524 = vmatpush1.bf16.xpose.msra.mxu0 0
      %525 = vmatprep.subr.bf16.mxu0 0
      %526 = vmatpush1.bf16.xpose.msra.mxu0 0
      %527 = vmatprep.subr.bf16.mxu0 0
      %528 = vmatpush1.bf16.xpose.msra.mxu0 0
      %529 = vmatprep.subr.bf16.mxu0 0
      %530 = vmatpush1.bf16.xpose.msra.mxu0 0
      %531 = vmatprep.subr.bf16.mxu0 0
      %532 = vmatpush1.bf16.xpose.msra.mxu0 0
      %533 = vmatprep.mubr.bf16.mxu0 0
      %534 = vmatmul.mubr.bf16.gmra.mrb[0].mxu0 %v496
      %v535 = vpop.f32.mrb[0].mxu0
      %v536 = vadd.f32 %v389, %v535
      %v537 = vpop.f32.mrb[0].mxu0
      %v538 = vpop.f32.mrb[0].mxu0
      %v539 = vadd.f32 %v390, %v538
      %v540 = vpop.f32.mrb[0].mxu0
      %541 = vdwg.mxu0
      %543 = vrot.lane.b32.xlu0 %v388, 96
      %v544 = vpop.permute.xlu0 %543
      %v546 = vsel %vm394, %v388, 0
      %v549 = vsel %vm394, %v544, 0
      %551 = vmatprep.subr.bf16.mxu0 0
      %552 = vmatpush1.bf16.xpose.msra.mxu0 %v549
      %553 = vmatprep.subr.bf16.mxu0 0
      %554 = vmatpush1.bf16.xpose.msra.mxu0 0
      %555 = vmatprep.subr.bf16.mxu0 0
      %556 = vmatpush1.bf16.xpose.msra.mxu0 0
      %557 = vmatprep.subr.bf16.mxu0 0
      %558 = vmatpush1.bf16.xpose.msra.mxu0 0
      %559 = vmatprep.subr.bf16.mxu0 0
      %560 = vmatpush1.bf16.xpose.msra.mxu0 0
      %561 = vmatprep.subr.bf16.mxu0 0
      %562 = vmatpush1.bf16.xpose.msra.mxu0 0
      %563 = vmatprep.subr.bf16.mxu0 0
      %564 = vmatpush1.bf16.xpose.msra.mxu0 0
      %565 = vmatprep.subr.bf16.mxu0 0
      %566 = vmatpush1.bf16.xpose.msra.mxu0 0
      %567 = vmatprep.subr.bf16.mxu0 0
      %568 = vmatpush1.bf16.xpose.msra.mxu0 0
      %569 = vmatprep.subr.bf16.mxu0 0
      %570 = vmatpush1.bf16.xpose.msra.mxu0 0
      %571 = vmatprep.subr.bf16.mxu0 0
      %572 = vmatpush1.bf16.xpose.msra.mxu0 0
      %573 = vmatprep.subr.bf16.mxu0 0
      %574 = vmatpush1.bf16.xpose.msra.mxu0 0
      %575 = vmatprep.subr.bf16.mxu0 0
      %576 = vmatpush1.bf16.xpose.msra.mxu0 0
      %577 = vmatprep.subr.bf16.mxu0 0
      %578 = vmatpush1.bf16.xpose.msra.mxu0 0
      %579 = vmatprep.subr.bf16.mxu0 0
      %580 = vmatpush1.bf16.xpose.msra.mxu0 0
      %581 = vmatprep.subr.bf16.mxu0 0
      %582 = vmatpush1.bf16.xpose.msra.mxu0 0
      %583 = vmatprep.mubr.bf16.mxu0 0
      %584 = vmatmul.mubr.bf16.gmra.mrb[0].mxu0 %v546
      %v585 = vpop.f32.mrb[0].mxu0
      %v586 = vadd.f32 %v389, %v585
      %v587 = vpop.f32.mrb[0].mxu0
      %v588 = vpop.f32.mrb[0].mxu0
      %v589 = vadd.f32 %v390, %v588
      %v590 = vpop.f32.mrb[0].mxu0
      %591 = vdwg.mxu0
      %vm592 = vcmask 130048
      %v593 = vsel %vm592, %v436, -inf
      %594 = vmax.xlane.f32.xlu0 %v593
      %v595 = vpop.xlane.xlu0 %594
      %v596 = vsel %vm592, %v439, -inf
      %597 = vmax.xlane.f32.xlu0 %v596
      %v598 = vpop.xlane.xlu0 %597
      %v599 = vsel %vm592, %v486, -inf
      %600 = vmax.xlane.f32.xlu0 %v599
      %v601 = vpop.xlane.xlu0 %600
      %v602 = vsel %vm592, %v489, -inf
      %603 = vmax.xlane.f32.xlu0 %v602
      %v604 = vpop.xlane.xlu0 %603
      %v605 = vsel %vm592, %v536, -inf
      %606 = vmax.xlane.f32.xlu0 %v605
      %v607 = vpop.xlane.xlu0 %606
      %v608 = vsel %vm592, %v539, -inf
      %609 = vmax.xlane.f32.xlu0 %v608
      %v610 = vpop.xlane.xlu0 %609
      %v611 = vsel %vm592, %v586, -inf
      %612 = vmax.xlane.f32.xlu0 %v611
      %v613 = vpop.xlane.xlu0 %612
      %v614 = vsel %vm592, %v589, -inf
      %615 = vmax.xlane.f32.xlu0 %v614
      %v616 = vpop.xlane.xlu0 %615
      %v617 = vsub.f32 %v436, %v595
      %v618 = vsub.f32 %v439, %v598
      %v619 = vsub.f32 %v486, %v601
      %v620 = vsub.f32 %v489, %v604
      %v621 = vsub.f32 %v536, %v607
      %v622 = vsub.f32 %v539, %v610
      %v623 = vsub.f32 %v586, %v613
      %v624 = vsub.f32 %v589, %v616
      %v625 = vmul.f32 %v617, 1.442695
      %v626 = vpow.pop %v625
      %v627 = vmul.f32 %v618, 1.442695
      %v628 = vpow.pop %v627
      %v629 = vmul.f32 %v619, 1.442695
      %v630 = vpow.pop %v629
      %v631 = vmul.f32 %v620, 1.442695
      %v632 = vpow.pop %v631
      %v633 = vmul.f32 %v621, 1.442695
      %v634 = vpow.pop %v633
      %v635 = vmul.f32 %v622, 1.442695
      %v636 = vpow.pop %v635
      %v637 = vmul.f32 %v623, 1.442695
      %v638 = vpow.pop %v637
      %v639 = vmul.f32 %v624, 1.442695
      %v640 = vpow.pop %v639
      %v641 = vsel %vm592, %v626, 0.0
      %642 = vadd.xlane.f32.xlu0 %v641
      %v643 = vpop.xlane.xlu0 %642
      %v644 = vsel %vm592, %v628, 0.0
      %645 = vadd.xlane.f32.xlu0 %v644
      %v646 = vpop.xlane.xlu0 %645
      %v647 = vsel %vm592, %v630, 0.0
      %648 = vadd.xlane.f32.xlu0 %v647
      %v649 = vpop.xlane.xlu0 %648
      %v650 = vsel %vm592, %v632, 0.0
      %651 = vadd.xlane.f32.xlu0 %v650
      %v652 = vpop.xlane.xlu0 %651
      %v653 = vsel %vm592, %v634, 0.0
      %654 = vadd.xlane.f32.xlu0 %v653
      %v655 = vpop.xlane.xlu0 %654
      %v656 = vsel %vm592, %v636, 0.0
      %657 = vadd.xlane.f32.xlu0 %v656
      %v658 = vpop.xlane.xlu0 %657
      %v659 = vsel %vm592, %v638, 0.0
      %660 = vadd.xlane.f32.xlu0 %v659
      %v661 = vpop.xlane.xlu0 %660
      %v662 = vsel %vm592, %v640, 0.0
      %663 = vadd.xlane.f32.xlu0 %v662
      %v664 = vpop.xlane.xlu0 %663
      %v665 = vrcp.pop %v643
      %v666 = vrcp.pop %v646
      %v667 = vrcp.pop %v649
      %v668 = vrcp.pop %v652
      %v669 = vrcp.pop %v655
      %v670 = vrcp.pop %v658
      %v671 = vrcp.pop %v661
      %v672 = vrcp.pop %v664
      %v673 = vmul.f32 %v626, %v665
      %v674 = vmul.f32 %v628, %v666
      %v675 = vmul.f32 %v630, %v667
      %v676 = vmul.f32 %v632, %v668
      %v677 = vmul.f32 %v634, %v669
      %v678 = vmul.f32 %v636, %v670
      %v679 = vmul.f32 %v638, %v671
      %v680 = vmul.f32 %v640, %v672
      %v681 = vpack.c.bf16 %v674, %v673
      %v682 = vpack.c.bf16 %v676, %v675
      %v683 = vpack.c.bf16 %v678, %v677
      %v684 = vpack.c.bf16 %v680, %v679
      %685 = vrot.lane.b32.xlu0 %v385, 64
      %v686 = vpop.permute.xlu0 %685
      %v689 = vsel %vm592, %v681, 0
      %691 = vmatprep.subr.bf16.mxu0 0
      %692 = vmatpush1.bf16.msra.mxu0 %v686
      %693 = vmatprep.subr.bf16.mxu0 0
      %694 = vmatpush1.bf16.msra.mxu0 0
      %695 = vmatprep.subr.bf16.mxu0 0
      %696 = vmatpush1.bf16.msra.mxu0 0
      %697 = vmatprep.subr.bf16.mxu0 0
      %698 = vmatpush1.bf16.msra.mxu0 0
      %699 = vmatprep.subr.bf16.mxu0 0
      %700 = vmatpush1.bf16.msra.mxu0 0
      %701 = vmatprep.subr.bf16.mxu0 0
      %702 = vmatpush1.bf16.msra.mxu0 0
      %703 = vmatprep.subr.bf16.mxu0 0
      %704 = vmatpush1.bf16.msra.mxu0 0
      %705 = vmatprep.subr.bf16.mxu0 0
      %706 = vmatpush1.bf16.msra.mxu0 0
      %707 = vmatprep.subr.bf16.mxu0 0
      %708 = vmatpush1.bf16.msra.mxu0 0
      %709 = vmatprep.subr.bf16.mxu0 0
      %710 = vmatpush1.bf16.msra.mxu0 0
      %711 = vmatprep.subr.bf16.mxu0 0
      %712 = vmatpush1.bf16.msra.mxu0 0
      %713 = vmatprep.subr.bf16.mxu0 0
      %714 = vmatpush1.bf16.msra.mxu0 0
      %715 = vmatprep.subr.bf16.mxu0 0
      %716 = vmatpush1.bf16.msra.mxu0 0
      %717 = vmatprep.subr.bf16.mxu0 0
      %718 = vmatpush1.bf16.msra.mxu0 0
      %719 = vmatprep.subr.bf16.mxu0 0
      %720 = vmatpush1.bf16.msra.mxu0 0
      %721 = vmatprep.subr.bf16.mxu0 0
      %722 = vmatpush1.bf16.msra.mxu0 0
      %723 = vmatprep.mubr.bf16.mxu0 0
      %724 = vmatmul.mubr.bf16.gmra.mrb[0].mxu0 %v689
      %v725 = vpop.f32.mrb[0].mxu0
      %v726 = vadd.f32 0.0, %v725
      %v727 = vpop.f32.mrb[0].mxu0
      %v728 = vpop.f32.mrb[0].mxu0
      %v729 = vadd.f32 0.0, %v728
      %v730 = vpop.f32.mrb[0].mxu0
      %731 = vdwg.mxu0
      %732 = vrot.lane.b32.xlu0 %v386, 64
      %v733 = vpop.permute.xlu0 %732
      %v736 = vsel %vm592, %v682, 0
      %738 = vmatprep.subr.bf16.mxu0 0
      %739 = vmatpush1.bf16.msra.mxu0 %v733
      %740 = vmatprep.subr.bf16.mxu0 0
      %741 = vmatpush1.bf16.msra.mxu0 0
      %742 = vmatprep.subr.bf16.mxu0 0
      %743 = vmatpush1.bf16.msra.mxu0 0
      %744 = vmatprep.subr.bf16.mxu0 0
      %745 = vmatpush1.bf16.msra.mxu0 0
      %746 = vmatprep.subr.bf16.mxu0 0
      %747 = vmatpush1.bf16.msra.mxu0 0
      %748 = vmatprep.subr.bf16.mxu0 0
      %749 = vmatpush1.bf16.msra.mxu0 0
      %750 = vmatprep.subr.bf16.mxu0 0
      %751 = vmatpush1.bf16.msra.mxu0 0
      %752 = vmatprep.subr.bf16.mxu0 0
      %753 = vmatpush1.bf16.msra.mxu0 0
      %754 = vmatprep.subr.bf16.mxu0 0
      %755 = vmatpush1.bf16.msra.mxu0 0
      %756 = vmatprep.subr.bf16.mxu0 0
      %757 = vmatpush1.bf16.msra.mxu0 0
      %758 = vmatprep.subr.bf16.mxu0 0
      %759 = vmatpush1.bf16.msra.mxu0 0
      %760 = vmatprep.subr.bf16.mxu0 0
      %761 = vmatpush1.bf16.msra.mxu0 0
      %762 = vmatprep.subr.bf16.mxu0 0
      %763 = vmatpush1.bf16.msra.mxu0 0
      %764 = vmatprep.subr.bf16.mxu0 0
      %765 = vmatpush1.bf16.msra.mxu0 0
      %766 = vmatprep.subr.bf16.mxu0 0
      %767 = vmatpush1.bf16.msra.mxu0 0
      %768 = vmatprep.subr.bf16.mxu0 0
      %769 = vmatpush1.bf16.msra.mxu0 0
      %770 = vmatprep.mubr.bf16.mxu0 0
      %771 = vmatmul.mubr.bf16.gmra.mrb[0].mxu0 %v736
      %v772 = vpop.f32.mrb[0].mxu0
      %v773 = vadd.f32 0.0, %v772
      %v774 = vpop.f32.mrb[0].mxu0
      %v775 = vpop.f32.mrb[0].mxu0
      %v776 = vadd.f32 0.0, %v775
      %v777 = vpop.f32.mrb[0].mxu0
      %778 = vdwg.mxu0
      %779 = vrot.lane.b32.xlu0 %v387, 64
      %v780 = vpop.permute.xlu0 %779
      %v783 = vsel %vm592, %v683, 0
      %785 = vmatprep.subr.bf16.mxu0 0
      %786 = vmatpush1.bf16.msra.mxu0 %v780
      %787 = vmatprep.subr.bf16.mxu0 0
      %788 = vmatpush1.bf16.msra.mxu0 0
      %789 = vmatprep.subr.bf16.mxu0 0
      %790 = vmatpush1.bf16.msra.mxu0 0
      %791 = vmatprep.subr.bf16.mxu0 0
      %792 = vmatpush1.bf16.msra.mxu0 0
      %793 = vmatprep.subr.bf16.mxu0 0
      %794 = vmatpush1.bf16.msra.mxu0 0
      %795 = vmatprep.subr.bf16.mxu0 0
      %796 = vmatpush1.bf16.msra.mxu0 0
      %797 = vmatprep.subr.bf16.mxu0 0
      %798 = vmatpush1.bf16.msra.mxu0 0
      %799 = vmatprep.subr.bf16.mxu0 0
      %800 = vmatpush1.bf16.msra.mxu0 0
      %801 = vmatprep.subr.bf16.mxu0 0
      %802 = vmatpush1.bf16.msra.mxu0 0
      %803 = vmatprep.subr.bf16.mxu0 0
      %804 = vmatpush1.bf16.msra.mxu0 0
      %805 = vmatprep.subr.bf16.mxu0 0
      %806 = vmatpush1.bf16.msra.mxu0 0
      %807 = vmatprep.subr.bf16.mxu0 0
      %808 = vmatpush1.bf16.msra.mxu0 0
      %809 = vmatprep.subr.bf16.mxu0 0
      %810 = vmatpush1.bf16.msra.mxu0 0
      %811 = vmatprep.subr.bf16.mxu0 0
      %812 = vmatpush1.bf16.msra.mxu0 0
      %813 = vmatprep.subr.bf16.mxu0 0
      %814 = vmatpush1.bf16.msra.mxu0 0
      %815 = vmatprep.subr.bf16.mxu0 0
      %816 = vmatpush1.bf16.msra.mxu0 0
      %817 = vmatprep.mubr.bf16.mxu0 0
      %818 = vmatmul.mubr.bf16.gmra.mrb[0].mxu0 %v783
      %v819 = vpop.f32.mrb[0].mxu0
      %v820 = vadd.f32 0.0, %v819
      %v821 = vpop.f32.mrb[0].mxu0
      %v822 = vpop.f32.mrb[0].mxu0
      %v823 = vadd.f32 0.0, %v822
      %v824 = vpop.f32.mrb[0].mxu0
      %825 = vdwg.mxu0
      %826 = vrot.lane.b32.xlu0 %v388, 64
      %v827 = vpop.permute.xlu0 %826
      %v830 = vsel %vm592, %v684, 0
      %832 = vmatprep.subr.bf16.mxu0 0
      %833 = vmatpush1.bf16.msra.mxu0 %v827
      %834 = vmatprep.subr.bf16.mxu0 0
      %835 = vmatpush1.bf16.msra.mxu0 0
      %836 = vmatprep.subr.bf16.mxu0 0
      %837 = vmatpush1.bf16.msra.mxu0 0
      %838 = vmatprep.subr.bf16.mxu0 0
      %839 = vmatpush1.bf16.msra.mxu0 0
      %840 = vmatprep.subr.bf16.mxu0 0
      %841 = vmatpush1.bf16.msra.mxu0 0
      %842 = vmatprep.subr.bf16.mxu0 0
      %843 = vmatpush1.bf16.msra.mxu0 0
      %844 = vmatprep.subr.bf16.mxu0 0
      %845 = vmatpush1.bf16.msra.mxu0 0
      %846 = vmatprep.subr.bf16.mxu0 0
      %847 = vmatpush1.bf16.msra.mxu0 0
      %848 = vmatprep.subr.bf16.mxu0 0
      %849 = vmatpush1.bf16.msra.mxu0 0
      %850 = vmatprep.subr.bf16.mxu0 0
      %851 = vmatpush1.bf16.msra.mxu0 0
      %852 = vmatprep.subr.bf16.mxu0 0
      %853 = vmatpush1.bf16.msra.mxu0 0
      %854 = vmatprep.subr.bf16.mxu0 0
      %855 = vmatpush1.bf16.msra.mxu0 0
      %856 = vmatprep.subr.bf16.mxu0 0
      %857 = vmatpush1.bf16.msra.mxu0 0
      %858 = vmatprep.subr.bf16.mxu0 0
      %859 = vmatpush1.bf16.msra.mxu0 0
      %860 = vmatprep.subr.bf16.mxu0 0
      %861 = vmatpush1.bf16.msra.mxu0 0
      %862 = vmatprep.subr.bf16.mxu0 0
      %863 = vmatpush1.bf16.msra.mxu0 0
      %864 = vmatprep.mubr.bf16.mxu0 0
      %865 = vmatmul.mubr.bf16.gmra.mrb[0].mxu0 %v830
      %v866 = vpop.f32.mrb[0].mxu0
      %v867 = vadd.f32 0.0, %v866
      %v868 = vpop.f32.mrb[0].mxu0
      %v869 = vpop.f32.mrb[0].mxu0
      %v870 = vadd.f32 0.0, %v869
      %v871 = vpop.f32.mrb[0].mxu0
      %872 = vdwg.mxu0
      %v873 = vpack.c.bf16 %v729, %v726
      %v874 = vpack.c.bf16 %v776, %v773
      %v875 = vpack.c.bf16 %v823, %v820
      %v876 = vpack.c.bf16 %v870, %v867
      %877 = vst.msk [vmem:[#allocation2] sm:$0xff] %vm394, %v873
      %878 = vst.msk [vmem:[#allocation2 + $0x8] sm:$0xff] %vm394, %v874
      %879 = vst.msk [vmem:[#allocation2 + $0x10] sm:$0xff] %vm394, %v875
      %880 = vst.msk [vmem:[#allocation2 + $0x18] sm:$0xff] %vm394, %v876
      %s881 = scalar_lea.vmem %s5, 16
      %v882 = vld [vmem:[%s881] sm:$0xff]
      %v883 = vld [vmem:[%s881 + $0x8] sm:$0xff]
      %884 = vrot.lane.b32.xlu0 %v385, 120
      %v885 = vpop.permute.xlu0 %884
      %886 = vrot.lane.b32.xlu0 %v385, 88
      %v887 = vpop.permute.xlu0 %886
      %v889 = vsel %vm394, %v885, 0
      %v892 = vsel %vm394, %v887, 0
      %894 = vmatprep.subr.bf16.mxu0 0
      %895 = vmatpush1.bf16.xpose.msra.mxu0 %v892
      %896 = vmatprep.subr.bf16.mxu0 0
      %897 = vmatpush1.bf16.xpose.msra.mxu0 0
      %898 = vmatprep.subr.bf16.mxu0 0
      %899 = vmatpush1.bf16.xpose.msra.mxu0 0
      %900 = vmatprep.subr.bf16.mxu0 0
      %901 = vmatpush1.bf16.xpose.msra.mxu0 0
      %902 = vmatprep.subr.bf16.mxu0 0
      %903 = vmatpush1.bf16.xpose.msra.mxu0 0
      %904 = vmatprep.subr.bf16.mxu0 0
      %905 = vmatpush1.bf16.xpose.msra.mxu0 0
      %906 = vmatprep.subr.bf16.mxu0 0
      %907 = vmatpush1.bf16.xpose.msra.mxu0 0
      %908 = vmatprep.subr.bf16.mxu0 0
      %909 = vmatpush1.bf16.xpose.msra.mxu0 0
      %910 = vmatprep.subr.bf16.mxu0 0
      %911 = vmatpush1.bf16.xpose.msra.mxu0 0
      %912 = vmatprep.subr.bf16.mxu0 0
      %913 = vmatpush1.bf16.xpose.msra.mxu0 0
      %914 = vmatprep.subr.bf16.mxu0 0
      %915 = vmatpush1.bf16.xpose.msra.mxu0 0
      %916 = vmatprep.subr.bf16.mxu0 0
      %917 = vmatpush1.bf16.xpose.msra.mxu0 0
      %918 = vmatprep.subr.bf16.mxu0 0
      %919 = vmatpush1.bf16.xpose.msra.mxu0 0
      %920 = vmatprep.subr.bf16.mxu0 0
      %921 = vmatpush1.bf16.xpose.msra.mxu0 0
      %922 = vmatprep.subr.bf16.mxu0 0
      %923 = vmatpush1.bf16.xpose.msra.mxu0 0
      %924 = vmatprep.subr.bf16.mxu0 0
      %925 = vmatpush1.bf16.xpose.msra.mxu0 0
      %926 = vmatprep.mubr.bf16.mxu0 0
      %927 = vmatmul.mubr.bf16.gmra.mrb[0].mxu0 %v889
      %v928 = vpop.f32.mrb[0].mxu0
      %v929 = vadd.f32 %v882, %v928
      %v930 = vpop.f32.mrb[0].mxu0
      %v931 = vpop.f32.mrb[0].mxu0
      %v932 = vadd.f32 %v883, %v931
      %v933 = vpop.f32.mrb[0].mxu0
      %934 = vdwg.mxu0
      %935 = vrot.lane.b32.xlu0 %v386, 120
      %v936 = vpop.permute.xlu0 %935
      %937 = vrot.lane.b32.xlu0 %v386, 88
      %v938 = vpop.permute.xlu0 %937
      %v940 = vsel %vm394, %v936, 0
      %v943 = vsel %vm394, %v938, 0
      %945 = vmatprep.subr.bf16.mxu0 0
      %946 = vmatpush1.bf16.xpose.msra.mxu0 %v943
      %947 = vmatprep.subr.bf16.mxu0 0
      %948 = vmatpush1.bf16.xpose.msra.mxu0 0
      %949 = vmatprep.subr.bf16.mxu0 0
      %950 = vmatpush1.bf16.xpose.msra.mxu0 0
      %951 = vmatprep.subr.bf16.mxu0 0
      %952 = vmatpush1.bf16.xpose.msra.mxu0 0
      %953 = vmatprep.subr.bf16.mxu0 0
      %954 = vmatpush1.bf16.xpose.msra.mxu0 0
      %955 = vmatprep.subr.bf16.mxu0 0
      %956 = vmatpush1.bf16.xpose.msra.mxu0 0
      %957 = vmatprep.subr.bf16.mxu0 0
      %958 = vmatpush1.bf16.xpose.msra.mxu0 0
      %959 = vmatprep.subr.bf16.mxu0 0
      %960 = vmatpush1.bf16.xpose.msra.mxu0 0
      %961 = vmatprep.subr.bf16.mxu0 0
      %962 = vmatpush1.bf16.xpose.msra.mxu0 0
      %963 = vmatprep.subr.bf16.mxu0 0
      %964 = vmatpush1.bf16.xpose.msra.mxu0 0
      %965 = vmatprep.subr.bf16.mxu0 0
      %966 = vmatpush1.bf16.xpose.msra.mxu0 0
      %967 = vmatprep.subr.bf16.mxu0 0
      %968 = vmatpush1.bf16.xpose.msra.mxu0 0
      %969 = vmatprep.subr.bf16.mxu0 0
      %970 = vmatpush1.bf16.xpose.msra.mxu0 0
      %971 = vmatprep.subr.bf16.mxu0 0
      %972 = vmatpush1.bf16.xpose.msra.mxu0 0
      %973 = vmatprep.subr.bf16.mxu0 0
      %974 = vmatpush1.bf16.xpose.msra.mxu0 0
      %975 = vmatprep.subr.bf16.mxu0 0
      %976 = vmatpush1.bf16.xpose.msra.mxu0 0
      %977 = vmatprep.mubr.bf16.mxu0 0
      %978 = vmatmul.mubr.bf16.gmra.mrb[0].mxu0 %v940
      %v979 = vpop.f32.mrb[0].mxu0
      %v980 = vadd.f32 %v882, %v979
      %v981 = vpop.f32.mrb[0].mxu0
      %v982 = vpop.f32.mrb[0].mxu0
      %v983 = vadd.f32 %v883, %v982
      %v984 = vpop.f32.mrb[0].mxu0
      %985 = vdwg.mxu0
      %986 = vrot.lane.b32.xlu0 %v387, 120
      %v987 = vpop.permute.xlu0 %986
      %988 = vrot.lane.b32.xlu0 %v387, 88
      %v989 = vpop.permute.xlu0 %988
      %v991 = vsel %vm394, %v987, 0
      %v994 = vsel %vm394, %v989, 0
      %996 = vmatprep.subr.bf16.mxu0 0
      %997 = vmatpush1.bf16.xpose.msra.mxu0 %v994
      %998 = vmatprep.subr.bf16.mxu0 0
      %999 = vmatpush1.bf16.xpose.msra.mxu0 0
      %1000 = vmatprep.subr.bf16.mxu0 0
      %1001 = vmatpush1.bf16.xpose.msra.mxu0 0
      %1002 = vmatprep.subr.bf16.mxu0 0
      %1003 = vmatpush1.bf16.xpose.msra.mxu0 0
      %1004 = vmatprep.subr.bf16.mxu0 0
      %1005 = vmatpush1.bf16.xpose.msra.mxu0 0
      %1006 = vmatprep.subr.bf16.mxu0 0
      %1007 = vmatpush1.bf16.xpose.msra.mxu0 0
      %1008 = vmatprep.subr.bf16.mxu0 0
      %1009 = vmatpush1.bf16.xpose.msra.mxu0 0
      %1010 = vmatprep.subr.bf16.mxu0 0
      %1011 = vmatpush1.bf16.xpose.msra.mxu0 0
      %1012 = vmatprep.subr.bf16.mxu0 0
      %1013 = vmatpush1.bf16.xpose.msra.mxu0 0
      %1014 = vmatprep.subr.bf16.mxu0 0
      %1015 = vmatpush1.bf16.xpose.msra.mxu0 0
      %1016 = vmatprep.subr.bf16.mxu0 0
      %1017 = vmatpush1.bf16.xpose.msra.mxu0 0
      %1018 = vmatprep.subr.bf16.mxu0 0
      %1019 = vmatpush1.bf16.xpose.msra.mxu0 0
      %1020 = vmatprep.subr.bf16.mxu0 0
      %1021 = vmatpush1.bf16.xpose.msra.mxu0 0
      %1022 = vmatprep.subr.bf16.mxu0 0
      %1023 = vmatpush1.bf16.xpose.msra.mxu0 0
      %1024 = vmatprep.subr.bf16.mxu0 0
      %1025 = vmatpush1.bf16.xpose.msra.mxu0 0
      %1026 = vmatprep.subr.bf16.mxu0 0
      %1027 = vmatpush1.bf16.xpose.msra.mxu0 0
      %1028 = vmatprep.mubr.bf16.mxu0 0
      %1029 = vmatmul.mubr.bf16.gmra.mrb[0].mxu0 %v991
      %v1030 = vpop.f32.mrb[0].mxu0
      %v1031 = vadd.f32 %v882, %v1030
      %v1032 = vpop.f32.mrb[0].mxu0
      %v1033 = vpop.f32.mrb[0].mxu0
      %v1034 = vadd.f32 %v883, %v1033
      %v1035 = vpop.f32.mrb[0].mxu0
      %1036 = vdwg.mxu0
      %1037 = vrot.lane.b32.xlu0 %v388, 120
      %v1038 = vpop.permute.xlu0 %1037
      %1039 = vrot.lane.b32.xlu0 %v388, 88
      %v1040 = vpop.permute.xlu0 %1039
      %v1042 = vsel %vm394, %v1038, 0
      %v1045 = vsel %vm394, %v1040, 0
      %1047 = vmatprep.subr.bf16.mxu0 0
      %1048 = vmatpush1.bf16.xpose.msra.mxu0 %v1045
      %1049 = vmatprep.subr.bf16.mxu0 0
      %1050 = vmatpush1.bf16.xpose.msra.mxu0 0
      %1051 = vmatprep.subr.bf16.mxu0 0
      %1052 = vmatpush1.bf16.xpose.msra.mxu0 0
      %1053 = vmatprep.subr.bf16.mxu0 0
      %1054 = vmatpush1.bf16.xpose.msra.mxu0 0
      %1055 = vmatprep.subr.bf16.mxu0 0
      %1056 = vmatpush1.bf16.xpose.msra.mxu0 0
      %1057 = vmatprep.subr.bf16.mxu0 0
      %1058 = vmatpush1.bf16.xpose.msra.mxu0 0
      %1059 = vmatprep.subr.bf16.mxu0 0
      %1060 = vmatpush1.bf16.xpose.msra.mxu0 0
      %1061 = vmatprep.subr.bf16.mxu0 0
      %1062 = vmatpush1.bf16.xpose.msra.mxu0 0
      %1063 = vmatprep.subr.bf16.mxu0 0
      %1064 = vmatpush1.bf16.xpose.msra.mxu0 0
      %1065 = vmatprep.subr.bf16.mxu0 0
      %1066 = vmatpush1.bf16.xpose.msra.mxu0 0
      %1067 = vmatprep.subr.bf16.mxu0 0
      %1068 = vmatpush1.bf16.xpose.msra.mxu0 0
      %1069 = vmatprep.subr.bf16.mxu0 0
      %1070 = vmatpush1.bf16.xpose.msra.mxu0 0
      %1071 = vmatprep.subr.bf16.mxu0 0
      %1072 = vmatpush1.bf16.xpose.msra.mxu0 0
      %1073 = vmatprep.subr.bf16.mxu0 0
      %1074 = vmatpush1.bf16.xpose.msra.mxu0 0
      %1075 = vmatprep.subr.bf16.mxu0 0
      %1076 = vmatpush1.bf16.xpose.msra.mxu0 0
      %1077 = vmatprep.subr.bf16.mxu0 0
      %1078 = vmatpush1.bf16.xpose.msra.mxu0 0
      %1079 = vmatprep.mubr.bf16.mxu0 0
      %1080 = vmatmul.mubr.bf16.gmra.mrb[0].mxu0 %v1042
      %v1081 = vpop.f32.mrb[0].mxu0
      %v1082 = vadd.f32 %v882, %v1081
      %v1083 = vpop.f32.mrb[0].mxu0
      %v1084 = vpop.f32.mrb[0].mxu0
      %v1085 = vadd.f32 %v883, %v1084
      %v1086 = vpop.f32.mrb[0].mxu0
      %1087 = vdwg.mxu0
      %v1088 = vsel %vm592, %v929, -inf
      %1089 = vmax.xlane.f32.xlu0 %v1088
      %v1090 = vpop.xlane.xlu0 %1089
      %v1091 = vsel %vm592, %v932, -inf
      %1092 = vmax.xlane.f32.xlu0 %v1091
      %v1093 = vpop.xlane.xlu0 %1092
      %v1094 = vsel %vm592, %v980, -inf
      %1095 = vmax.xlane.f32.xlu0 %v1094
      %v1096 = vpop.xlane.xlu0 %1095
      %v1097 = vsel %vm592, %v983, -inf
      %1098 = vmax.xlane.f32.xlu0 %v1097
      %v1099 = vpop.xlane.xlu0 %1098
      %v1100 = vsel %vm592, %v1031, -inf
      %1101 = vmax.xlane.f32.xlu0 %v1100
      %v1102 = vpop.xlane.xlu0 %1101
      %v1103 = vsel %vm592, %v1034, -inf
      %1104 = vmax.xlane.f32.xlu0 %v1103
      %v1105 = vpop.xlane.xlu0 %1104
      %v1106 = vsel %vm592, %v1082, -inf
      %1107 = vmax.xlane.f32.xlu0 %v1106
      %v1108 = vpop.xlane.xlu0 %1107
      %v1109 = vsel %vm592, %v1085, -inf
      %1110 = vmax.xlane.f32.xlu0 %v1109
      %v1111 = vpop.xlane.xlu0 %1110
      %v1112 = vsub.f32 %v929, %v1090
      %v1113 = vsub.f32 %v932, %v1093
      %v1114 = vsub.f32 %v980, %v1096
      %v1115 = vsub.f32 %v983, %v1099
      %v1116 = vsub.f32 %v1031, %v1102
      %v1117 = vsub.f32 %v1034, %v1105
      %v1118 = vsub.f32 %v1082, %v1108
      %v1119 = vsub.f32 %v1085, %v1111
      %v1120 = vmul.f32 %v1112, 1.442695
      %v1121 = vpow.pop %v1120
      %v1122 = vmul.f32 %v1113, 1.442695
      %v1123 = vpow.pop %v1122
      %v1124 = vmul.f32 %v1114, 1.442695
      %v1125 = vpow.pop %v1124
      %v1126 = vmul.f32 %v1115, 1.442695
      %v1127 = vpow.pop %v1126
      %v1128 = vmul.f32 %v1116, 1.442695
      %v1129 = vpow.pop %v1128
      %v1130 = vmul.f32 %v1117, 1.442695
      %v1131 = vpow.pop %v1130
      %v1132 = vmul.f32 %v1118, 1.442695
      %v1133 = vpow.pop %v1132
      %v1134 = vmul.f32 %v1119, 1.442695
      %v1135 = vpow.pop %v1134
      %v1136 = vsel %vm592, %v1121, 0.0
      %1137 = vadd.xlane.f32.xlu0 %v1136
      %v1138 = vpop.xlane.xlu0 %1137
      %v1139 = vsel %vm592, %v1123, 0.0
      %1140 = vadd.xlane.f32.xlu0 %v1139
      %v1141 = vpop.xlane.xlu0 %1140
      %v1142 = vsel %vm592, %v1125, 0.0
      %1143 = vadd.xlane.f32.xlu0 %v1142
      %v1144 = vpop.xlane.xlu0 %1143
      %v1145 = vsel %vm592, %v1127, 0.0
      %1146 = vadd.xlane.f32.xlu0 %v1145
      %v1147 = vpop.xlane.xlu0 %1146
      %v1148 = vsel %vm592, %v1129, 0.0
      %1149 = vadd.xlane.f32.xlu0 %v1148
      %v1150 = vpop.xlane.xlu0 %1149
      %v1151 = vsel %vm592, %v1131, 0.0
      %1152 = vadd.xlane.f32.xlu0 %v1151
      %v1153 = vpop.xlane.xlu0 %1152
      %v1154 = vsel %vm592, %v1133, 0.0
      %1155 = vadd.xlane.f32.xlu0 %v1154
      %v1156 = vpop.xlane.xlu0 %1155
      %v1157 = vsel %vm592, %v1135, 0.0
      %1158 = vadd.xlane.f32.xlu0 %v1157
      %v1159 = vpop.xlane.xlu0 %1158
      %v1160 = vrcp.pop %v1138
      %v1161 = vrcp.pop %v1141
      %v1162 = vrcp.pop %v1144
      %v1163 = vrcp.pop %v1147
      %v1164 = vrcp.pop %v1150
      %v1165 = vrcp.pop %v1153
      %v1166 = vrcp.pop %v1156
      %v1167 = vrcp.pop %v1159
      %v1168 = vmul.f32 %v1121, %v1160
      %v1169 = vmul.f32 %v1123, %v1161
      %v1170 = vmul.f32 %v1125, %v1162
      %v1171 = vmul.f32 %v1127, %v1163
      %v1172 = vmul.f32 %v1129, %v1164
      %v1173 = vmul.f32 %v1131, %v1165
      %v1174 = vmul.f32 %v1133, %v1166
      %v1175 = vmul.f32 %v1135, %v1167
      %v1176 = vpack.c.bf16 %v1169, %v1168
      %v1177 = vpack.c.bf16 %v1171, %v1170
      %v1178 = vpack.c.bf16 %v1173, %v1172
      %v1179 = vpack.c.bf16 %v1175, %v1174
      %1180 = vrot.lane.b32.xlu0 %v385, 56
      %v1181 = vpop.permute.xlu0 %1180
      %v1184 = vsel %vm592, %v1176, 0
      %1186 = vmatprep.subr.bf16.mxu0 0
      %1187 = vmatpush1.bf16.msra.mxu0 %v1181
      %1188 = vmatprep.subr.bf16.mxu0 0
      %1189 = vmatpush1.bf16.msra.mxu0 0
      %1190 = vmatprep.subr.bf16.mxu0 0
      %1191 = vmatpush1.bf16.msra.mxu0 0
      %1192 = vmatprep.subr.bf16.mxu0 0
      %1193 = vmatpush1.bf16.msra.mxu0 0
      %1194 = vmatprep.subr.bf16.mxu0 0
      %1195 = vmatpush1.bf16.msra.mxu0 0
      %1196 = vmatprep.subr.bf16.mxu0 0
      %1197 = vmatpush1.bf16.msra.mxu0 0
      %1198 = vmatprep.subr.bf16.mxu0 0
      %1199 = vmatpush1.bf16.msra.mxu0 0
      %1200 = vmatprep.subr.bf16.mxu0 0
      %1201 = vmatpush1.bf16.msra.mxu0 0
      %1202 = vmatprep.subr.bf16.mxu0 0
      %1203 = vmatpush1.bf16.msra.mxu0 0
      %1204 = vmatprep.subr.bf16.mxu0 0
      %1205 = vmatpush1.bf16.msra.mxu0 0
      %1206 = vmatprep.subr.bf16.mxu0 0
      %1207 = vmatpush1.bf16.msra.mxu0 0
      %1208 = vmatprep.subr.bf16.mxu0 0
      %1209 = vmatpush1.bf16.msra.mxu0 0
      %1210 = vmatprep.subr.bf16.mxu0 0
      %1211 = vmatpush1.bf16.msra.mxu0 0
      %1212 = vmatprep.subr.bf16.mxu0 0
      %1213 = vmatpush1.bf16.msra.mxu0 0
      %1214 = vmatprep.subr.bf16.mxu0 0
      %1215 = vmatpush1.bf16.msra.mxu0 0
      %1216 = vmatprep.subr.bf16.mxu0 0
      %1217 = vmatpush1.bf16.msra.mxu0 0
      %1218 = vmatprep.mubr.bf16.mxu0 0
      %1219 = vmatmul.mubr.bf16.gmra.mrb[0].mxu0 %v1184
      %v1220 = vpop.f32.mrb[0].mxu0
      %v1221 = vadd.f32 0.0, %v1220
      %v1222 = vpop.f32.mrb[0].mxu0
      %v1223 = vpop.f32.mrb[0].mxu0
      %v1224 = vadd.f32 0.0, %v1223
      %v1225 = vpop.f32.mrb[0].mxu0
      %1226 = vdwg.mxu0
      %1227 = vrot.lane.b32.xlu0 %v386, 56
      %v1228 = vpop.permute.xlu0 %1227
      %v1231 = vsel %vm592, %v1177, 0
      %1233 = vmatprep.subr.bf16.mxu0 0
      %1234 = vmatpush1.bf16.msra.mxu0 %v1228
      %1235 = vmatprep.subr.bf16.mxu0 0
      %1236 = vmatpush1.bf16.msra.mxu0 0
      %1237 = vmatprep.subr.bf16.mxu0 0
      %1238 = vmatpush1.bf16.msra.mxu0 0
      %1239 = vmatprep.subr.bf16.mxu0 0
      %1240 = vmatpush1.bf16.msra.mxu0 0
      %1241 = vmatprep.subr.bf16.mxu0 0
      %1242 = vmatpush1.bf16.msra.mxu0 0
      %1243 = vmatprep.subr.bf16.mxu0 0
      %1244 = vmatpush1.bf16.msra.mxu0 0
      %1245 = vmatprep.subr.bf16.mxu0 0
      %1246 = vmatpush1.bf16.msra.mxu0 0
      %1247 = vmatprep.subr.bf16.mxu0 0
      %1248 = vmatpush1.bf16.msra.mxu0 0
      %1249 = vmatprep.subr.bf16.mxu0 0
      %1250 = vmatpush1.bf16.msra.mxu0 0
      %1251 = vmatprep.subr.bf16.mxu0 0
      %1252 = vmatpush1.bf16.msra.mxu0 0
      %1253 = vmatprep.subr.bf16.mxu0 0
      %1254 = vmatpush1.bf16.msra.mxu0 0
      %1255 = vmatprep.subr.bf16.mxu0 0
      %1256 = vmatpush1.bf16.msra.mxu0 0
      %1257 = vmatprep.subr.bf16.mxu0 0
      %1258 = vmatpush1.bf16.msra.mxu0 0
      %1259 = vmatprep.subr.bf16.mxu0 0
      %1260 = vmatpush1.bf16.msra.mxu0 0
      %1261 = vmatprep.subr.bf16.mxu0 0
      %1262 = vmatpush1.bf16.msra.mxu0 0
      %1263 = vmatprep.subr.bf16.mxu0 0
      %1264 = vmatpush1.bf16.msra.mxu0 0
      %1265 = vmatprep.mubr.bf16.mxu0 0
      %1266 = vmatmul.mubr.bf16.gmra.mrb[0].mxu0 %v1231
      %v1267 = vpop.f32.mrb[0].mxu0
      %v1268 = vadd.f32 0.0, %v1267
      %v1269 = vpop.f32.mrb[0].mxu0
      %v1270 = vpop.f32.mrb[0].mxu0
      %v1271 = vadd.f32 0.0, %v1270
      %v1272 = vpop.f32.mrb[0].mxu0
      %1273 = vdwg.mxu0
      %1274 = vrot.lane.b32.xlu0 %v387, 56
      %v1275 = vpop.permute.xlu0 %1274
      %v1278 = vsel %vm592, %v1178, 0
      %1280 = vmatprep.subr.bf16.mxu0 0
      %1281 = vmatpush1.bf16.msra.mxu0 %v1275
      %1282 = vmatprep.subr.bf16.mxu0 0
      %1283 = vmatpush1.bf16.msra.mxu0 0
      %1284 = vmatprep.subr.bf16.mxu0 0
      %1285 = vmatpush1.bf16.msra.mxu0 0
      %1286 = vmatprep.subr.bf16.mxu0 0
      %1287 = vmatpush1.bf16.msra.mxu0 0
      %1288 = vmatprep.subr.bf16.mxu0 0
      %1289 = vmatpush1.bf16.msra.mxu0 0
      %1290 = vmatprep.subr.bf16.mxu0 0
      %1291 = vmatpush1.bf16.msra.mxu0 0
      %1292 = vmatprep.subr.bf16.mxu0 0
      %1293 = vmatpush1.bf16.msra.mxu0 0
      %1294 = vmatprep.subr.bf16.mxu0 0
      %1295 = vmatpush1.bf16.msra.mxu0 0
      %1296 = vmatprep.subr.bf16.mxu0 0
      %1297 = vmatpush1.bf16.msra.mxu0 0
      %1298 = vmatprep.subr.bf16.mxu0 0
      %1299 = vmatpush1.bf16.msra.mxu0 0
      %1300 = vmatprep.subr.bf16.mxu0 0
      %1301 = vmatpush1.bf16.msra.mxu0 0
      %1302 = vmatprep.subr.bf16.mxu0 0
      %1303 = vmatpush1.bf16.msra.mxu0 0
      %1304 = vmatprep.subr.bf16.mxu0 0
      %1305 = vmatpush1.bf16.msra.mxu0 0
      %1306 = vmatprep.subr.bf16.mxu0 0
      %1307 = vmatpush1.bf16.msra.mxu0 0
      %1308 = vmatprep.subr.bf16.mxu0 0
      %1309 = vmatpush1.bf16.msra.mxu0 0
      %1310 = vmatprep.subr.bf16.mxu0 0
      %1311 = vmatpush1.bf16.msra.mxu0 0
      %1312 = vmatprep.mubr.bf16.mxu0 0
      %1313 = vmatmul.mubr.bf16.gmra.mrb[0].mxu0 %v1278
      %v1314 = vpop.f32.mrb[0].mxu0
      %v1315 = vadd.f32 0.0, %v1314
      %v1316 = vpop.f32.mrb[0].mxu0
      %v1317 = vpop.f32.mrb[0].mxu0
      %v1318 = vadd.f32 0.0, %v1317
      %v1319 = vpop.f32.mrb[0].mxu0
      %1320 = vdwg.mxu0
      %1321 = vrot.lane.b32.xlu0 %v388, 56
      %v1322 = vpop.permute.xlu0 %1321
      %v1325 = vsel %vm592, %v1179, 0
      %1327 = vmatprep.subr.bf16.mxu0 0
      %1328 = vmatpush1.bf16.msra.mxu0 %v1322
      %1329 = vmatprep.subr.bf16.mxu0 0
      %1330 = vmatpush1.bf16.msra.mxu0 0
      %1331 = vmatprep.subr.bf16.mxu0 0
      %1332 = vmatpush1.bf16.msra.mxu0 0
      %1333 = vmatprep.subr.bf16.mxu0 0
      %1334 = vmatpush1.bf16.msra.mxu0 0
      %1335 = vmatprep.subr.bf16.mxu0 0
      %1336 = vmatpush1.bf16.msra.mxu0 0
      %1337 = vmatprep.subr.bf16.mxu0 0
      %1338 = vmatpush1.bf16.msra.mxu0 0
      %1339 = vmatprep.subr.bf16.mxu0 0
      %1340 = vmatpush1.bf16.msra.mxu0 0
      %1341 = vmatprep.subr.bf16.mxu0 0
      %1342 = vmatpush1.bf16.msra.mxu0 0
      %1343 = vmatprep.subr.bf16.mxu0 0
      %1344 = vmatpush1.bf16.msra.mxu0 0
      %1345 = vmatprep.subr.bf16.mxu0 0
      %1346 = vmatpush1.bf16.msra.mxu0 0
      %1347 = vmatprep.subr.bf16.mxu0 0
      %1348 = vmatpush1.bf16.msra.mxu0 0
      %1349 = vmatprep.subr.bf16.mxu0 0
      %1350 = vmatpush1.bf16.msra.mxu0 0
      %1351 = vmatprep.subr.bf16.mxu0 0
      %1352 = vmatpush1.bf16.msra.mxu0 0
      %1353 = vmatprep.subr.bf16.mxu0 0
      %1354 = vmatpush1.bf16.msra.mxu0 0
      %1355 = vmatprep.subr.bf16.mxu0 0
      %1356 = vmatpush1.bf16.msra.mxu0 0
      %1357 = vmatprep.subr.bf16.mxu0 0
      %1358 = vmatpush1.bf16.msra.mxu0 0
      %1359 = vmatprep.mubr.bf16.mxu0 0
      %1360 = vmatmul.mubr.bf16.gmra.mrb[0].mxu0 %v1325
      %v1361 = vpop.f32.mrb[0].mxu0
      %v1362 = vadd.f32 0.0, %v1361
      %v1363 = vpop.f32.mrb[0].mxu0
      %v1364 = vpop.f32.mrb[0].mxu0
      %v1365 = vadd.f32 0.0, %v1364
      %v1366 = vpop.f32.mrb[0].mxu0
      %1367 = vdwg.mxu0
      %v1368 = vpack.c.bf16 %v1224, %v1221
      %v1369 = vpack.c.bf16 %v1271, %v1268
      %v1370 = vpack.c.bf16 %v1318, %v1315
      %v1371 = vpack.c.bf16 %v1365, %v1362
      %1376 = vrot.lane.b32.xlu0 %v1368, 8
      %v1377 = vpop.permute.xlu0 %1376
      %1378 = vrot.lane.b32.xlu0 %v1369, 8
      %v1379 = vpop.permute.xlu0 %1378
      %1380 = vrot.lane.b32.xlu0 %v1370, 8
      %v1381 = vpop.permute.xlu0 %1380
      %1382 = vrot.lane.b32.xlu0 %v1371, 8
      %v1383 = vpop.permute.xlu0 %1382
      %vm1388 = vcmask 130112
      %1389 = vst.msk [vmem:[#allocation2] sm:$0xff] %vm1388, %v1377
      %1390 = vst.msk [vmem:[#allocation2 + $0x8] sm:$0xff] %vm1388, %v1379
      %1391 = vst.msk [vmem:[#allocation2 + $0x10] sm:$0xff] %vm1388, %v1381
      %1392 = vst.msk [vmem:[#allocation2 + $0x18] sm:$0xff] %vm1388, %v1383
      %s1393 = scalar_lea.vmem %s5, 32
      %v1394 = vld [vmem:[%s1393] sm:$0xff]
      %v1395 = vld [vmem:[%s1393 + $0x8] sm:$0xff]
      %1396 = vrot.lane.b32.xlu0 %v385, 112
      %v1397 = vpop.permute.xlu0 %1396
      %1398 = vrot.lane.b32.xlu0 %v385, 80
      %v1399 = vpop.permute.xlu0 %1398
      %v1401 = vsel %vm394, %v1397, 0
      %v1404 = vsel %vm394, %v1399, 0
      %1406 = vmatprep.subr.bf16.mxu0 0
      %1407 = vmatpush1.bf16.xpose.msra.mxu0 %v1404
      %1408 = vmatprep.subr.bf16.mxu0 0
      %1409 = vmatpush1.bf16.xpose.msra.mxu0 0
      %1410 = vmatprep.subr.bf16.mxu0 0
      %1411 = vmatpush1.bf16.xpose.msra.mxu0 0
      %1412 = vmatprep.subr.bf16.mxu0 0
      %1413 = vmatpush1.bf16.xpose.msra.mxu0 0
      %1414 = vmatprep.subr.bf16.mxu0 0
      %1415 = vmatpush1.bf16.xpose.msra.mxu0 0
      %1416 = vmatprep.subr.bf16.mxu0 0
      %1417 = vmatpush1.bf16.xpose.msra.mxu0 0
      %1418 = vmatprep.subr.bf16.mxu0 0
      %1419 = vmatpush1.bf16.xpose.msra.mxu0 0
      %1420 = vmatprep.subr.bf16.mxu0 0
      %1421 = vmatpush1.bf16.xpose.msra.mxu0 0
      %1422 = vmatprep.subr.bf16.mxu0 0
      %1423 = vmatpush1.bf16.xpose.msra.mxu0 0
      %1424 = vmatprep.subr.bf16.mxu0 0
      %1425 = vmatpush1.bf16.xpose.msra.mxu0 0
      %1426 = vmatprep.subr.bf16.mxu0 0
      %1427 = vmatpush1.bf16.xpose.msra.mxu0 0
      %1428 = vmatprep.subr.bf16.mxu0 0
      %1429 = vmatpush1.bf16.xpose.msra.mxu0 0
      %1430 = vmatprep.subr.bf16.mxu0 0
      %1431 = vmatpush1.bf16.xpose.msra.mxu0 0
      %1432 = vmatprep.subr.bf16.mxu0 0
      %1433 = vmatpush1.bf16.xpose.msra.mxu0 0
      %1434 = vmatprep.subr.bf16.mxu0 0
      %1435 = vmatpush1.bf16.xpose.msra.mxu0 0
      %1436 = vmatprep.subr.bf16.mxu0 0
      %1437 = vmatpush1.bf16.xpose.msra.mxu0 0
      %1438 = vmatprep.mubr.bf16.mxu0 0
      %1439 = vmatmul.mubr.bf16.gmra.mrb[0].mxu0 %v1401
      %v1440 = vpop.f32.mrb[0].mxu0
      %v1441 = vadd.f32 %v1394, %v1440
      %v1442 = vpop.f32.mrb[0].mxu0
      %v1443 = vpop.f32.mrb[0].mxu0
      %v1444 = vadd.f32 %v1395, %v1443
      %v1445 = vpop.f32.mrb[0].mxu0
      %1446 = vdwg.mxu0
      %1447 = vrot.lane.b32.xlu0 %v386, 112
      %v1448 = vpop.permute.xlu0 %1447
      %1449 = vrot.lane.b32.xlu0 %v386, 80
      %v1450 = vpop.permute.xlu0 %1449
      %v1452 = vsel %vm394, %v1448, 0
      %v1455 = vsel %vm394, %v1450, 0
      %1457 = vmatprep.subr.bf16.mxu0 0
      %1458 = vmatpush1.bf16.xpose.msra.mxu0 %v1455
      %1459 = vmatprep.subr.bf16.mxu0 0
      %1460 = vmatpush1.bf16.xpose.msra.mxu0 0
      %1461 = vmatprep.subr.bf16.mxu0 0
      %1462 = vmatpush1.bf16.xpose.msra.mxu0 0
      %1463 = vmatprep.subr.bf16.mxu0 0
      %1464 = vmatpush1.bf16.xpose.msra.mxu0 0
      %1465 = vmatprep.subr.bf16.mxu0 0
      %1466 = vmatpush1.bf16.xpose.msra.mxu0 0
      %1467 = vmatprep.subr.bf16.mxu0 0
      %1468 = vmatpush1.bf16.xpose.msra.mxu0 0
      %1469 = vmatprep.subr.bf16.mxu0 0
      %1470 = vmatpush1.bf16.xpose.msra.mxu0 0
      %1471 = vmatprep.subr.bf16.mxu0 0
      %1472 = vmatpush1.bf16.xpose.msra.mxu0 0
      %1473 = vmatprep.subr.bf16.mxu0 0
      %1474 = vmatpush1.bf16.xpose.msra.mxu0 0
      %1475 = vmatprep.subr.bf16.mxu0 0
      %1476 = vmatpush1.bf16.xpose.msra.mxu0 0
      %1477 = vmatprep.subr.bf16.mxu0 0
      %1478 = vmatpush1.bf16.xpose.msra.mxu0 0
      %1479 = vmatprep.subr.bf16.mxu0 0
      %1480 = vmatpush1.bf16.xpose.msra.mxu0 0
      %1481 = vmatprep.subr.bf16.mxu0 0
      %1482 = vmatpush1.bf16.xpose.msra.mxu0 0
      %1483 = vmatprep.subr.bf16.mxu0 0
      %1484 = vmatpush1.bf16.xpose.msra.mxu0 0
      %1485 = vmatprep.subr.bf16.mxu0 0
      %1486 = vmatpush1.bf16.xpose.msra.mxu0 0
      %1487 = vmatprep.subr.bf16.mxu0 0
      %1488 = vmatpush1.bf16.xpose.msra.mxu0 0
      %1489 = vmatprep.mubr.bf16.mxu0 0
      %1490 = vmatmul.mubr.bf16.gmra.mrb[0].mxu0 %v1452
      %v1491 = vpop.f32.mrb[0].mxu0
      %v1492 = vadd.f32 %v1394, %v1491
      %v1493 = vpop.f32.mrb[0].mxu0
      %v1494 = vpop.f32.mrb[0].mxu0
      %v1495 = vadd.f32 %v1395, %v1494
      %v1496 = vpop.f32.mrb[0].mxu0
      %1497 = vdwg.mxu0
      %1498 = vrot.lane.b32.xlu0 %v387, 112
      %v1499 = vpop.permute.xlu0 %1498
      %1500 = vrot.lane.b32.xlu0 %v387, 80
      %v1501 = vpop.permute.xlu0 %1500
      %v1503 = vsel %vm394, %v1499, 0
      %v1506 = vsel %vm394, %v1501, 0
      %1508 = vmatprep.subr.bf16.mxu0 0
      %1509 = vmatpush1.bf16.xpose.msra.mxu0 %v1506
      %1510 = vmatprep.subr.bf16.mxu0 0
      %1511 = vmatpush1.bf16.xpose.msra.mxu0 0
      %1512 = vmatprep.subr.bf16.mxu0 0
      %1513 = vmatpush1.bf16.xpose.msra.mxu0 0
      %1514 = vmatprep.subr.bf16.mxu0 0
      %1515 = vmatpush1.bf16.xpose.msra.mxu0 0
      %1516 = vmatprep.subr.bf16.mxu0 0
      %1517 = vmatpush1.bf16.xpose.msra.mxu0 0
      %1518 = vmatprep.subr.bf16.mxu0 0
      %1519 = vmatpush1.bf16.xpose.msra.mxu0 0
      %1520 = vmatprep.subr.bf16.mxu0 0
      %1521 = vmatpush1.bf16.xpose.msra.mxu0 0
      %1522 = vmatprep.subr.bf16.mxu0 0
      %1523 = vmatpush1.bf16.xpose.msra.mxu0 0
      %1524 = vmatprep.subr.bf16.mxu0 0
      %1525 = vmatpush1.bf16.xpose.msra.mxu0 0
      %1526 = vmatprep.subr.bf16.mxu0 0
      %1527 = vmatpush1.bf16.xpose.msra.mxu0 0
      %1528 = vmatprep.subr.bf16.mxu0 0
      %1529 = vmatpush1.bf16.xpose.msra.mxu0 0
      %1530 = vmatprep.subr.bf16.mxu0 0
      %1531 = vmatpush1.bf16.xpose.msra.mxu0 0
      %1532 = vmatprep.subr.bf16.mxu0 0
      %1533 = vmatpush1.bf16.xpose.msra.mxu0 0
      %1534 = vmatprep.subr.bf16.mxu0 0
      %1535 = vmatpush1.bf16.xpose.msra.mxu0 0
      %1536 = vmatprep.subr.bf16.mxu0 0
      %1537 = vmatpush1.bf16.xpose.msra.mxu0 0
      %1538 = vmatprep.subr.bf16.mxu0 0
      %1539 = vmatpush1.bf16.xpose.msra.mxu0 0
      %1540 = vmatprep.mubr.bf16.mxu0 0
      %1541 = vmatmul.mubr.bf16.gmra.mrb[0].mxu0 %v1503
      %v1542 = vpop.f32.mrb[0].mxu0
      %v1543 = vadd.f32 %v1394, %v1542
      %v1544 = vpop.f32.mrb[0].mxu0
      %v1545 = vpop.f32.mrb[0].mxu0
      %v1546 = vadd.f32 %v1395, %v1545
      %v1547 = vpop.f32.mrb[0].mxu0
      %1548 = vdwg.mxu0
      %1549 = vrot.lane.b32.xlu0 %v388, 112
      %v1550 = vpop.permute.xlu0 %1549
      %1551 = vrot.lane.b32.xlu0 %v388, 80
      %v1552 = vpop.permute.xlu0 %1551
      %v1554 = vsel %vm394, %v1550, 0
      %v1557 = vsel %vm394, %v1552, 0
      %1559 = vmatprep.subr.bf16.mxu0 0
      %1560 = vmatpush1.bf16.xpose.msra.mxu0 %v1557
      %1561 = vmatprep.subr.bf16.mxu0 0
      %1562 = vmatpush1.bf16.xpose.msra.mxu0 0
      %1563 = vmatprep.subr.bf16.mxu0 0
      %1564 = vmatpush1.bf16.xpose.msra.mxu0 0
      %1565 = vmatprep.subr.bf16.mxu0 0
      %1566 = vmatpush1.bf16.xpose.msra.mxu0 0
      %1567 = vmatprep.subr.bf16.mxu0 0
      %1568 = vmatpush1.bf16.xpose.msra.mxu0 0
      %1569 = vmatprep.subr.bf16.mxu0 0
      %1570 = vmatpush1.bf16.xpose.msra.mxu0 0
      %1571 = vmatprep.subr.bf16.mxu0 0
      %1572 = vmatpush1.bf16.xpose.msra.mxu0 0
      %1573 = vmatprep.subr.bf16.mxu0 0
      %1574 = vmatpush1.bf16.xpose.msra.mxu0 0
      %1575 = vmatprep.subr.bf16.mxu0 0
      %1576 = vmatpush1.bf16.xpose.msra.mxu0 0
      %1577 = vmatprep.subr.bf16.mxu0 0
      %1578 = vmatpush1.bf16.xpose.msra.mxu0 0
      %1579 = vmatprep.subr.bf16.mxu0 0
      %1580 = vmatpush1.bf16.xpose.msra.mxu0 0
      %1581 = vmatprep.subr.bf16.mxu0 0
      %1582 = vmatpush1.bf16.xpose.msra.mxu0 0
      %1583 = vmatprep.subr.bf16.mxu0 0
      %1584 = vmatpush1.bf16.xpose.msra.mxu0 0
      %1585 = vmatprep.subr.bf16.mxu0 0
      %1586 = vmatpush1.bf16.xpose.msra.mxu0 0
      %1587 = vmatprep.subr.bf16.mxu0 0
      %1588 = vmatpush1.bf16.xpose.msra.mxu0 0
      %1589 = vmatprep.subr.bf16.mxu0 0
      %1590 = vmatpush1.bf16.xpose.msra.mxu0 0
      %1591 = vmatprep.mubr.bf16.mxu0 0
      %1592 = vmatmul.mubr.bf16.gmra.mrb[0].mxu0 %v1554
      %v1593 = vpop.f32.mrb[0].mxu0
      %v1594 = vadd.f32 %v1394, %v1593
      %v1595 = vpop.f32.mrb[0].mxu0
      %v1596 = vpop.f32.mrb[0].mxu0
      %v1597 = vadd.f32 %v1395, %v1596
      %v1598 = vpop.f32.mrb[0].mxu0
      %1599 = vdwg.mxu0
      %v1600 = vsel %vm592, %v1441, -inf
      %1601 = vmax.xlane.f32.xlu0 %v1600
      %v1602 = vpop.xlane.xlu0 %1601
      %v1603 = vsel %vm592, %v1444, -inf
      %1604 = vmax.xlane.f32.xlu0 %v1603
      %v1605 = vpop.xlane.xlu0 %1604
      %v1606 = vsel %vm592, %v1492, -inf
      %1607 = vmax.xlane.f32.xlu0 %v1606
      %v1608 = vpop.xlane.xlu0 %1607
      %v1609 = vsel %vm592, %v1495, -inf
      %1610 = vmax.xlane.f32.xlu0 %v1609
      %v1611 = vpop.xlane.xlu0 %1610
      %v1612 = vsel %vm592, %v1543, -inf
      %1613 = vmax.xlane.f32.xlu0 %v1612
      %v1614 = vpop.xlane.xlu0 %1613
      %v1615 = vsel %vm592, %v1546, -inf
      %1616 = vmax.xlane.f32.xlu0 %v1615
      %v1617 = vpop.xlane.xlu0 %1616
      %v1618 = vsel %vm592, %v1594, -inf
      %1619 = vmax.xlane.f32.xlu0 %v1618
      %v1620 = vpop.xlane.xlu0 %1619
      %v1621 = vsel %vm592, %v1597, -inf
      %1622 = vmax.xlane.f32.xlu0 %v1621
      %v1623 = vpop.xlane.xlu0 %1622
      %v1624 = vsub.f32 %v1441, %v1602
      %v1625 = vsub.f32 %v1444, %v1605
      %v1626 = vsub.f32 %v1492, %v1608
      %v1627 = vsub.f32 %v1495, %v1611
      %v1628 = vsub.f32 %v1543, %v1614
      %v1629 = vsub.f32 %v1546, %v1617
      %v1630 = vsub.f32 %v1594, %v1620
      %v1631 = vsub.f32 %v1597, %v1623
      %v1632 = vmul.f32 %v1624, 1.442695
      %v1633 = vpow.pop %v1632
      %v1634 = vmul.f32 %v1625, 1.442695
      %v1635 = vpow.pop %v1634
      %v1636 = vmul.f32 %v1626, 1.442695
      %v1637 = vpow.pop %v1636
      %v1638 = vmul.f32 %v1627, 1.442695
      %v1639 = vpow.pop %v1638
      %v1640 = vmul.f32 %v1628, 1.442695
      %v1641 = vpow.pop %v1640
      %v1642 = vmul.f32 %v1629, 1.442695
      %v1643 = vpow.pop %v1642
      %v1644 = vmul.f32 %v1630, 1.442695
      %v1645 = vpow.pop %v1644
      %v1646 = vmul.f32 %v1631, 1.442695
      %v1647 = vpow.pop %v1646
      %v1648 = vsel %vm592, %v1633, 0.0
      %1649 = vadd.xlane.f32.xlu0 %v1648
      %v1650 = vpop.xlane.xlu0 %1649
      %v1651 = vsel %vm592, %v1635, 0.0
      %1652 = vadd.xlane.f32.xlu0 %v1651
      %v1653 = vpop.xlane.xlu0 %1652
      %v1654 = vsel %vm592, %v1637, 0.0
      %1655 = vadd.xlane.f32.xlu0 %v1654
      %v1656 = vpop.xlane.xlu0 %1655
      %v1657 = vsel %vm592, %v1639, 0.0
      %1658 = vadd.xlane.f32.xlu0 %v1657
      %v1659 = vpop.xlane.xlu0 %1658
      %v1660 = vsel %vm592, %v1641, 0.0
      %1661 = vadd.xlane.f32.xlu0 %v1660
      %v1662 = vpop.xlane.xlu0 %1661
      %v1663 = vsel %vm592, %v1643, 0.0
      %1664 = vadd.xlane.f32.xlu0 %v1663
      %v1665 = vpop.xlane.xlu0 %1664
      %v1666 = vsel %vm592, %v1645, 0.0
      %1667 = vadd.xlane.f32.xlu0 %v1666
      %v1668 = vpop.xlane.xlu0 %1667
      %v1669 = vsel %vm592, %v1647, 0.0
      %1670 = vadd.xlane.f32.xlu0 %v1669
      %v1671 = vpop.xlane.xlu0 %1670
      %v1672 = vrcp.pop %v1650
      %v1673 = vrcp.pop %v1653
      %v1674 = vrcp.pop %v1656
      %v1675 = vrcp.pop %v1659
      %v1676 = vrcp.pop %v1662
      %v1677 = vrcp.pop %v1665
      %v1678 = vrcp.pop %v1668
      %v1679 = vrcp.pop %v1671
      %v1680 = vmul.f32 %v1633, %v1672
      %v1681 = vmul.f32 %v1635, %v1673
      %v1682 = vmul.f32 %v1637, %v1674
      %v1683 = vmul.f32 %v1639, %v1675
      %v1684 = vmul.f32 %v1641, %v1676
      %v1685 = vmul.f32 %v1643, %v1677
      %v1686 = vmul.f32 %v1645, %v1678
      %v1687 = vmul.f32 %v1647, %v1679
      %v1688 = vpack.c.bf16 %v1681, %v1680
      %v1689 = vpack.c.bf16 %v1683, %v1682
      %v1690 = vpack.c.bf16 %v1685, %v1684
      %v1691 = vpack.c.bf16 %v1687, %v1686
      %1692 = vrot.lane.b32.xlu0 %v385, 48
      %v1693 = vpop.permute.xlu0 %1692
      %v1696 = vsel %vm592, %v1688, 0
      %1698 = vmatprep.subr.bf16.mxu0 0
      %1699 = vmatpush1.bf16.msra.mxu0 %v1693
      %1700 = vmatprep.subr.bf16.mxu0 0
      %1701 = vmatpush1.bf16.msra.mxu0 0
      %1702 = vmatprep.subr.bf16.mxu0 0
      %1703 = vmatpush1.bf16.msra.mxu0 0
      %1704 = vmatprep.subr.bf16.mxu0 0
      %1705 = vmatpush1.bf16.msra.mxu0 0
      %1706 = vmatprep.subr.bf16.mxu0 0
      %1707 = vmatpush1.bf16.msra.mxu0 0
      %1708 = vmatprep.subr.bf16.mxu0 0
      %1709 = vmatpush1.bf16.msra.mxu0 0
      %1710 = vmatprep.subr.bf16.mxu0 0
      %1711 = vmatpush1.bf16.msra.mxu0 0
      %1712 = vmatprep.subr.bf16.mxu0 0
      %1713 = vmatpush1.bf16.msra.mxu0 0
      %1714 = vmatprep.subr.bf16.mxu0 0
      %1715 = vmatpush1.bf16.msra.mxu0 0
      %1716 = vmatprep.subr.bf16.mxu0 0
      %1717 = vmatpush1.bf16.msra.mxu0 0
      %1718 = vmatprep.subr.bf16.mxu0 0
      %1719 = vmatpush1.bf16.msra.mxu0 0
      %1720 = vmatprep.subr.bf16.mxu0 0
      %1721 = vmatpush1.bf16.msra.mxu0 0
      %1722 = vmatprep.subr.bf16.mxu0 0
      %1723 = vmatpush1.bf16.msra.mxu0 0
      %1724 = vmatprep.subr.bf16.mxu0 0
      %1725 = vmatpush1.bf16.msra.mxu0 0
      %1726 = vmatprep.subr.bf16.mxu0 0
      %1727 = vmatpush1.bf16.msra.mxu0 0
      %1728 = vmatprep.subr.bf16.mxu0 0
      %1729 = vmatpush1.bf16.msra.mxu0 0
      %1730 = vmatprep.mubr.bf16.mxu0 0
      %1731 = vmatmul.mubr.bf16.gmra.mrb[0].mxu0 %v1696
      %v1732 = vpop.f32.mrb[0].mxu0
      %v1733 = vadd.f32 0.0, %v1732
      %v1734 = vpop.f32.mrb[0].mxu0
      %v1735 = vpop.f32.mrb[0].mxu0
      %v1736 = vadd.f32 0.0, %v1735
      %v1737 = vpop.f32.mrb[0].mxu0
      %1738 = vdwg.mxu0
      %1739 = vrot.lane.b32.xlu0 %v386, 48
      %v1740 = vpop.permute.xlu0 %1739
      %v1743 = vsel %vm592, %v1689, 0
      %1745 = vmatprep.subr.bf16.mxu0 0
      %1746 = vmatpush1.bf16.msra.mxu0 %v1740
      %1747 = vmatprep.subr.bf16.mxu0 0
      %1748 = vmatpush1.bf16.msra.mxu0 0
      %1749 = vmatprep.subr.bf16.mxu0 0
      %1750 = vmatpush1.bf16.msra.mxu0 0
      %1751 = vmatprep.subr.bf16.mxu0 0
      %1752 = vmatpush1.bf16.msra.mxu0 0
      %1753 = vmatprep.subr.bf16.mxu0 0
      %1754 = vmatpush1.bf16.msra.mxu0 0
      %1755 = vmatprep.subr.bf16.mxu0 0
      %1756 = vmatpush1.bf16.msra.mxu0 0
      %1757 = vmatprep.subr.bf16.mxu0 0
      %1758 = vmatpush1.bf16.msra.mxu0 0
      %1759 = vmatprep.subr.bf16.mxu0 0
      %1760 = vmatpush1.bf16.msra.mxu0 0
      %1761 = vmatprep.subr.bf16.mxu0 0
      %1762 = vmatpush1.bf16.msra.mxu0 0
      %1763 = vmatprep.subr.bf16.mxu0 0
      %1764 = vmatpush1.bf16.msra.mxu0 0
      %1765 = vmatprep.subr.bf16.mxu0 0
      %1766 = vmatpush1.bf16.msra.mxu0 0
      %1767 = vmatprep.subr.bf16.mxu0 0
      %1768 = vmatpush1.bf16.msra.mxu0 0
      %1769 = vmatprep.subr.bf16.mxu0 0
      %1770 = vmatpush1.bf16.msra.mxu0 0
      %1771 = vmatprep.subr.bf16.mxu0 0
      %1772 = vmatpush1.bf16.msra.mxu0 0
      %1773 = vmatprep.subr.bf16.mxu0 0
      %1774 = vmatpush1.bf16.msra.mxu0 0
      %1775 = vmatprep.subr.bf16.mxu0 0
      %1776 = vmatpush1.bf16.msra.mxu0 0
      %1777 = vmatprep.mubr.bf16.mxu0 0
      %1778 = vmatmul.mubr.bf16.gmra.mrb[0].mxu0 %v1743
      %v1779 = vpop.f32.mrb[0].mxu0
      %v1780 = vadd.f32 0.0, %v1779
      %v1781 = vpop.f32.mrb[0].mxu0
      %v1782 = vpop.f32.mrb[0].mxu0
      %v1783 = vadd.f32 0.0, %v1782
      %v1784 = vpop.f32.mrb[0].mxu0
      %1785 = vdwg.mxu0
      %1786 = vrot.lane.b32.xlu0 %v387, 48
      %v1787 = vpop.permute.xlu0 %1786
      %v1790 = vsel %vm592, %v1690, 0
      %1792 = vmatprep.subr.bf16.mxu0 0
      %1793 = vmatpush1.bf16.msra.mxu0 %v1787
      %1794 = vmatprep.subr.bf16.mxu0 0
      %1795 = vmatpush1.bf16.msra.mxu0 0
      %1796 = vmatprep.subr.bf16.mxu0 0
      %1797 = vmatpush1.bf16.msra.mxu0 0
      %1798 = vmatprep.subr.bf16.mxu0 0
      %1799 = vmatpush1.bf16.msra.mxu0 0
      %1800 = vmatprep.subr.bf16.mxu0 0
      %1801 = vmatpush1.bf16.msra.mxu0 0
      %1802 = vmatprep.subr.bf16.mxu0 0
      %1803 = vmatpush1.bf16.msra.mxu0 0
      %1804 = vmatprep.subr.bf16.mxu0 0
      %1805 = vmatpush1.bf16.msra.mxu0 0
      %1806 = vmatprep.subr.bf16.mxu0 0
      %1807 = vmatpush1.bf16.msra.mxu0 0
      %1808 = vmatprep.subr.bf16.mxu0 0
      %1809 = vmatpush1.bf16.msra.mxu0 0
      %1810 = vmatprep.subr.bf16.mxu0 0
      %1811 = vmatpush1.bf16.msra.mxu0 0
      %1812 = vmatprep.subr.bf16.mxu0 0
      %1813 = vmatpush1.bf16.msra.mxu0 0
      %1814 = vmatprep.subr.bf16.mxu0 0
      %1815 = vmatpush1.bf16.msra.mxu0 0
      %1816 = vmatprep.subr.bf16.mxu0 0
      %1817 = vmatpush1.bf16.msra.mxu0 0
      %1818 = vmatprep.subr.bf16.mxu0 0
      %1819 = vmatpush1.bf16.msra.mxu0 0
      %1820 = vmatprep.subr.bf16.mxu0 0
      %1821 = vmatpush1.bf16.msra.mxu0 0
      %1822 = vmatprep.subr.bf16.mxu0 0
      %1823 = vmatpush1.bf16.msra.mxu0 0
      %1824 = vmatprep.mubr.bf16.mxu0 0
      %1825 = vmatmul.mubr.bf16.gmra.mrb[0].mxu0 %v1790
      %v1826 = vpop.f32.mrb[0].mxu0
      %v1827 = vadd.f32 0.0, %v1826
      %v1828 = vpop.f32.mrb[0].mxu0
      %v1829 = vpop.f32.mrb[0].mxu0
      %v1830 = vadd.f32 0.0, %v1829
      %v1831 = vpop.f32.mrb[0].mxu0
      %1832 = vdwg.mxu0
      %1833 = vrot.lane.b32.xlu0 %v388, 48
      %v1834 = vpop.permute.xlu0 %1833
      %v1837 = vsel %vm592, %v1691, 0
      %1839 = vmatprep.subr.bf16.mxu0 0
      %1840 = vmatpush1.bf16.msra.mxu0 %v1834
      %1841 = vmatprep.subr.bf16.mxu0 0
      %1842 = vmatpush1.bf16.msra.mxu0 0
      %1843 = vmatprep.subr.bf16.mxu0 0
      %1844 = vmatpush1.bf16.msra.mxu0 0
      %1845 = vmatprep.subr.bf16.mxu0 0
      %1846 = vmatpush1.bf16.msra.mxu0 0
      %1847 = vmatprep.subr.bf16.mxu0 0
      %1848 = vmatpush1.bf16.msra.mxu0 0
      %1849 = vmatprep.subr.bf16.mxu0 0
      %1850 = vmatpush1.bf16.msra.mxu0 0
      %1851 = vmatprep.subr.bf16.mxu0 0
      %1852 = vmatpush1.bf16.msra.mxu0 0
      %1853 = vmatprep.subr.bf16.mxu0 0
      %1854 = vmatpush1.bf16.msra.mxu0 0
      %1855 = vmatprep.subr.bf16.mxu0 0
      %1856 = vmatpush1.bf16.msra.mxu0 0
      %1857 = vmatprep.subr.bf16.mxu0 0
      %1858 = vmatpush1.bf16.msra.mxu0 0
      %1859 = vmatprep.subr.bf16.mxu0 0
      %1860 = vmatpush1.bf16.msra.mxu0 0
      %1861 = vmatprep.subr.bf16.mxu0 0
      %1862 = vmatpush1.bf16.msra.mxu0 0
      %1863 = vmatprep.subr.bf16.mxu0 0
      %1864 = vmatpush1.bf16.msra.mxu0 0
      %1865 = vmatprep.subr.bf16.mxu0 0
      %1866 = vmatpush1.bf16.msra.mxu0 0
      %1867 = vmatprep.subr.bf16.mxu0 0
      %1868 = vmatpush1.bf16.msra.mxu0 0
      %1869 = vmatprep.subr.bf16.mxu0 0
      %1870 = vmatpush1.bf16.msra.mxu0 0
      %1871 = vmatprep.mubr.bf16.mxu0 0
      %1872 = vmatmul.mubr.bf16.gmra.mrb[0].mxu0 %v1837
      %v1873 = vpop.f32.mrb[0].mxu0
      %v1874 = vadd.f32 0.0, %v1873
      %v1875 = vpop.f32.mrb[0].mxu0
      %v1876 = vpop.f32.mrb[0].mxu0
      %v1877 = vadd.f32 0.0, %v1876
      %v1878 = vpop.f32.mrb[0].mxu0
      %1879 = vdwg.mxu0
      %v1880 = vpack.c.bf16 %v1736, %v1733
      %v1881 = vpack.c.bf16 %v1783, %v1780
      %v1882 = vpack.c.bf16 %v1830, %v1827
      %v1883 = vpack.c.bf16 %v1877, %v1874
      %1888 = vrot.lane.b32.xlu0 %v1880, 16
      %v1889 = vpop.permute.xlu0 %1888
      %1890 = vrot.lane.b32.xlu0 %v1881, 16
      %v1891 = vpop.permute.xlu0 %1890
      %1892 = vrot.lane.b32.xlu0 %v1882, 16
      %v1893 = vpop.permute.xlu0 %1892
      %1894 = vrot.lane.b32.xlu0 %v1883, 16
      %v1895 = vpop.permute.xlu0 %1894
      %vm1900 = vcmask 195712
      %1901 = vst.msk [vmem:[#allocation2] sm:$0xff] %vm1900, %v1889
      %1902 = vst.msk [vmem:[#allocation2 + $0x8] sm:$0xff] %vm1900, %v1891
      %1903 = vst.msk [vmem:[#allocation2 + $0x10] sm:$0xff] %vm1900, %v1893
      %1904 = vst.msk [vmem:[#allocation2 + $0x18] sm:$0xff] %vm1900, %v1895
      %s1905 = scalar_lea.vmem %s5, 48
      %v1906 = vld [vmem:[%s1905] sm:$0xff]
      %v1907 = vld [vmem:[%s1905 + $0x8] sm:$0xff]
      %1908 = vrot.lane.b32.xlu0 %v385, 104
      %v1909 = vpop.permute.xlu0 %1908
      %1910 = vrot.lane.b32.xlu0 %v385, 72
      %v1911 = vpop.permute.xlu0 %1910
      %v1913 = vsel %vm394, %v1909, 0
      %v1916 = vsel %vm394, %v1911, 0
      %1918 = vmatprep.subr.bf16.mxu0 0
      %1919 = vmatpush1.bf16.xpose.msra.mxu0 %v1916
      %1920 = vmatprep.subr.bf16.mxu0 0
      %1921 = vmatpush1.bf16.xpose.msra.mxu0 0
      %1922 = vmatprep.subr.bf16.mxu0 0
      %1923 = vmatpush1.bf16.xpose.msra.mxu0 0
      %1924 = vmatprep.subr.bf16.mxu0 0
      %1925 = vmatpush1.bf16.xpose.msra.mxu0 0
      %1926 = vmatprep.subr.bf16.mxu0 0
      %1927 = vmatpush1.bf16.xpose.msra.mxu0 0
      %1928 = vmatprep.subr.bf16.mxu0 0
      %1929 = vmatpush1.bf16.xpose.msra.mxu0 0
      %1930 = vmatprep.subr.bf16.mxu0 0
      %1931 = vmatpush1.bf16.xpose.msra.mxu0 0
      %1932 = vmatprep.subr.bf16.mxu0 0
      %1933 = vmatpush1.bf16.xpose.msra.mxu0 0
      %1934 = vmatprep.subr.bf16.mxu0 0
      %1935 = vmatpush1.bf16.xpose.msra.mxu0 0
      %1936 = vmatprep.subr.bf16.mxu0 0
      %1937 = vmatpush1.bf16.xpose.msra.mxu0 0
      %1938 = vmatprep.subr.bf16.mxu0 0
      %1939 = vmatpush1.bf16.xpose.msra.mxu0 0
      %1940 = vmatprep.subr.bf16.mxu0 0
      %1941 = vmatpush1.bf16.xpose.msra.mxu0 0
      %1942 = vmatprep.subr.bf16.mxu0 0
      %1943 = vmatpush1.bf16.xpose.msra.mxu0 0
      %1944 = vmatprep.subr.bf16.mxu0 0
      %1945 = vmatpush1.bf16.xpose.msra.mxu0 0
      %1946 = vmatprep.subr.bf16.mxu0 0
      %1947 = vmatpush1.bf16.xpose.msra.mxu0 0
      %1948 = vmatprep.subr.bf16.mxu0 0
      %1949 = vmatpush1.bf16.xpose.msra.mxu0 0
      %1950 = vmatprep.mubr.bf16.mxu0 0
      %1951 = vmatmul.mubr.bf16.gmra.mrb[0].mxu0 %v1913
      %v1952 = vpop.f32.mrb[0].mxu0
      %v1953 = vadd.f32 %v1906, %v1952
      %v1954 = vpop.f32.mrb[0].mxu0
      %v1955 = vpop.f32.mrb[0].mxu0
      %v1956 = vadd.f32 %v1907, %v1955
      %v1957 = vpop.f32.mrb[0].mxu0
      %1958 = vdwg.mxu0
      %1959 = vrot.lane.b32.xlu0 %v386, 104
      %v1960 = vpop.permute.xlu0 %1959
      %1961 = vrot.lane.b32.xlu0 %v386, 72
      %v1962 = vpop.permute.xlu0 %1961
      %v1964 = vsel %vm394, %v1960, 0
      %v1967 = vsel %vm394, %v1962, 0
      %1969 = vmatprep.subr.bf16.mxu0 0
      %1970 = vmatpush1.bf16.xpose.msra.mxu0 %v1967
      %1971 = vmatprep.subr.bf16.mxu0 0
      %1972 = vmatpush1.bf16.xpose.msra.mxu0 0
      %1973 = vmatprep.subr.bf16.mxu0 0
      %1974 = vmatpush1.bf16.xpose.msra.mxu0 0
      %1975 = vmatprep.subr.bf16.mxu0 0
      %1976 = vmatpush1.bf16.xpose.msra.mxu0 0
      %1977 = vmatprep.subr.bf16.mxu0 0
      %1978 = vmatpush1.bf16.xpose.msra.mxu0 0
      %1979 = vmatprep.subr.bf16.mxu0 0
      %1980 = vmatpush1.bf16.xpose.msra.mxu0 0
      %1981 = vmatprep.subr.bf16.mxu0 0
      %1982 = vmatpush1.bf16.xpose.msra.mxu0 0
      %1983 = vmatprep.subr.bf16.mxu0 0
      %1984 = vmatpush1.bf16.xpose.msra.mxu0 0
      %1985 = vmatprep.subr.bf16.mxu0 0
      %1986 = vmatpush1.bf16.xpose.msra.mxu0 0
      %1987 = vmatprep.subr.bf16.mxu0 0
      %1988 = vmatpush1.bf16.xpose.msra.mxu0 0
      %1989 = vmatprep.subr.bf16.mxu0 0
      %1990 = vmatpush1.bf16.xpose.msra.mxu0 0
      %1991 = vmatprep.subr.bf16.mxu0 0
      %1992 = vmatpush1.bf16.xpose.msra.mxu0 0
      %1993 = vmatprep.subr.bf16.mxu0 0
      %1994 = vmatpush1.bf16.xpose.msra.mxu0 0
      %1995 = vmatprep.subr.bf16.mxu0 0
      %1996 = vmatpush1.bf16.xpose.msra.mxu0 0
      %1997 = vmatprep.subr.bf16.mxu0 0
      %1998 = vmatpush1.bf16.xpose.msra.mxu0 0
      %1999 = vmatprep.subr.bf16.mxu0 0
      %2000 = vmatpush1.bf16.xpose.msra.mxu0 0
      %2001 = vmatprep.mubr.bf16.mxu0 0
      %2002 = vmatmul.mubr.bf16.gmra.mrb[0].mxu0 %v1964
      %v2003 = vpop.f32.mrb[0].mxu0
      %v2004 = vadd.f32 %v1906, %v2003
      %v2005 = vpop.f32.mrb[0].mxu0
      %v2006 = vpop.f32.mrb[0].mxu0
      %v2007 = vadd.f32 %v1907, %v2006
      %v2008 = vpop.f32.mrb[0].mxu0
      %2009 = vdwg.mxu0
      %2010 = vrot.lane.b32.xlu0 %v387, 104
      %v2011 = vpop.permute.xlu0 %2010
      %2012 = vrot.lane.b32.xlu0 %v387, 72
      %v2013 = vpop.permute.xlu0 %2012
      %v2015 = vsel %vm394, %v2011, 0
      %v2018 = vsel %vm394, %v2013, 0
      %2020 = vmatprep.subr.bf16.mxu0 0
      %2021 = vmatpush1.bf16.xpose.msra.mxu0 %v2018
      %2022 = vmatprep.subr.bf16.mxu0 0
      %2023 = vmatpush1.bf16.xpose.msra.mxu0 0
      %2024 = vmatprep.subr.bf16.mxu0 0
      %2025 = vmatpush1.bf16.xpose.msra.mxu0 0
      %2026 = vmatprep.subr.bf16.mxu0 0
      %2027 = vmatpush1.bf16.xpose.msra.mxu0 0
      %2028 = vmatprep.subr.bf16.mxu0 0
      %2029 = vmatpush1.bf16.xpose.msra.mxu0 0
      %2030 = vmatprep.subr.bf16.mxu0 0
      %2031 = vmatpush1.bf16.xpose.msra.mxu0 0
      %2032 = vmatprep.subr.bf16.mxu0 0
      %2033 = vmatpush1.bf16.xpose.msra.mxu0 0
      %2034 = vmatprep.subr.bf16.mxu0 0
      %2035 = vmatpush1.bf16.xpose.msra.mxu0 0
      %2036 = vmatprep.subr.bf16.mxu0 0
      %2037 = vmatpush1.bf16.xpose.msra.mxu0 0
      %2038 = vmatprep.subr.bf16.mxu0 0
      %2039 = vmatpush1.bf16.xpose.msra.mxu0 0
      %2040 = vmatprep.subr.bf16.mxu0 0
      %2041 = vmatpush1.bf16.xpose.msra.mxu0 0
      %2042 = vmatprep.subr.bf16.mxu0 0
      %2043 = vmatpush1.bf16.xpose.msra.mxu0 0
      %2044 = vmatprep.subr.bf16.mxu0 0
      %2045 = vmatpush1.bf16.xpose.msra.mxu0 0
      %2046 = vmatprep.subr.bf16.mxu0 0
      %2047 = vmatpush1.bf16.xpose.msra.mxu0 0
      %2048 = vmatprep.subr.bf16.mxu0 0
      %2049 = vmatpush1.bf16.xpose.msra.mxu0 0
      %2050 = vmatprep.subr.bf16.mxu0 0
      %2051 = vmatpush1.bf16.xpose.msra.mxu0 0
      %2052 = vmatprep.mubr.bf16.mxu0 0
      %2053 = vmatmul.mubr.bf16.gmra.mrb[0].mxu0 %v2015
      %v2054 = vpop.f32.mrb[0].mxu0
      %v2055 = vadd.f32 %v1906, %v2054
      %v2056 = vpop.f32.mrb[0].mxu0
      %v2057 = vpop.f32.mrb[0].mxu0
      %v2058 = vadd.f32 %v1907, %v2057
      %v2059 = vpop.f32.mrb[0].mxu0
      %2060 = vdwg.mxu0
      %2061 = vrot.lane.b32.xlu0 %v388, 104
      %v2062 = vpop.permute.xlu0 %2061
      %2063 = vrot.lane.b32.xlu0 %v388, 72
      %v2064 = vpop.permute.xlu0 %2063
      %v2066 = vsel %vm394, %v2062, 0
      %v2069 = vsel %vm394, %v2064, 0
      %2071 = vmatprep.subr.bf16.mxu0 0
      %2072 = vmatpush1.bf16.xpose.msra.mxu0 %v2069
      %2073 = vmatprep.subr.bf16.mxu0 0
      %2074 = vmatpush1.bf16.xpose.msra.mxu0 0
      %2075 = vmatprep.subr.bf16.mxu0 0
      %2076 = vmatpush1.bf16.xpose.msra.mxu0 0
      %2077 = vmatprep.subr.bf16.mxu0 0
      %2078 = vmatpush1.bf16.xpose.msra.mxu0 0
      %2079 = vmatprep.subr.bf16.mxu0 0
      %2080 = vmatpush1.bf16.xpose.msra.mxu0 0
      %2081 = vmatprep.subr.bf16.mxu0 0
      %2082 = vmatpush1.bf16.xpose.msra.mxu0 0
      %2083 = vmatprep.subr.bf16.mxu0 0
      %2084 = vmatpush1.bf16.xpose.msra.mxu0 0
      %2085 = vmatprep.subr.bf16.mxu0 0
      %2086 = vmatpush1.bf16.xpose.msra.mxu0 0
      %2087 = vmatprep.subr.bf16.mxu0 0
      %2088 = vmatpush1.bf16.xpose.msra.mxu0 0
      %2089 = vmatprep.subr.bf16.mxu0 0
      %2090 = vmatpush1.bf16.xpose.msra.mxu0 0
      %2091 = vmatprep.subr.bf16.mxu0 0
      %2092 = vmatpush1.bf16.xpose.msra.mxu0 0
      %2093 = vmatprep.subr.bf16.mxu0 0
      %2094 = vmatpush1.bf16.xpose.msra.mxu0 0
      %2095 = vmatprep.subr.bf16.mxu0 0
      %2096 = vmatpush1.bf16.xpose.msra.mxu0 0
      %2097 = vmatprep.subr.bf16.mxu0 0
      %2098 = vmatpush1.bf16.xpose.msra.mxu0 0
      %2099 = vmatprep.subr.bf16.mxu0 0
      %2100 = vmatpush1.bf16.xpose.msra.mxu0 0
      %2101 = vmatprep.subr.bf16.mxu0 0
      %2102 = vmatpush1.bf16.xpose.msra.mxu0 0
      %2103 = vmatprep.mubr.bf16.mxu0 0
      %2104 = vmatmul.mubr.bf16.gmra.mrb[0].mxu0 %v2066
      %v2105 = vpop.f32.mrb[0].mxu0
      %v2106 = vadd.f32 %v1906, %v2105
      %v2107 = vpop.f32.mrb[0].mxu0
      %v2108 = vpop.f32.mrb[0].mxu0
      %v2109 = vadd.f32 %v1907, %v2108
      %v2110 = vpop.f32.mrb[0].mxu0
      %2111 = vdwg.mxu0
      %v2112 = vsel %vm592, %v1953, -inf
      %2113 = vmax.xlane.f32.xlu0 %v2112
      %v2114 = vpop.xlane.xlu0 %2113
      %v2115 = vsel %vm592, %v1956, -inf
      %2116 = vmax.xlane.f32.xlu0 %v2115
      %v2117 = vpop.xlane.xlu0 %2116
      %v2118 = vsel %vm592, %v2004, -inf
      %2119 = vmax.xlane.f32.xlu0 %v2118
      %v2120 = vpop.xlane.xlu0 %2119
      %v2121 = vsel %vm592, %v2007, -inf
      %2122 = vmax.xlane.f32.xlu0 %v2121
      %v2123 = vpop.xlane.xlu0 %2122
      %v2124 = vsel %vm592, %v2055, -inf
      %2125 = vmax.xlane.f32.xlu0 %v2124
      %v2126 = vpop.xlane.xlu0 %2125
      %v2127 = vsel %vm592, %v2058, -inf
      %2128 = vmax.xlane.f32.xlu0 %v2127
      %v2129 = vpop.xlane.xlu0 %2128
      %v2130 = vsel %vm592, %v2106, -inf
      %2131 = vmax.xlane.f32.xlu0 %v2130
      %v2132 = vpop.xlane.xlu0 %2131
      %v2133 = vsel %vm592, %v2109, -inf
      %2134 = vmax.xlane.f32.xlu0 %v2133
      %v2135 = vpop.xlane.xlu0 %2134
      %v2136 = vsub.f32 %v1953, %v2114
      %v2137 = vsub.f32 %v1956, %v2117
      %v2138 = vsub.f32 %v2004, %v2120
      %v2139 = vsub.f32 %v2007, %v2123
      %v2140 = vsub.f32 %v2055, %v2126
      %v2141 = vsub.f32 %v2058, %v2129
      %v2142 = vsub.f32 %v2106, %v2132
      %v2143 = vsub.f32 %v2109, %v2135
      %v2144 = vmul.f32 %v2136, 1.442695
      %v2145 = vpow.pop %v2144
      %v2146 = vmul.f32 %v2137, 1.442695
      %v2147 = vpow.pop %v2146
      %v2148 = vmul.f32 %v2138, 1.442695
      %v2149 = vpow.pop %v2148
      %v2150 = vmul.f32 %v2139, 1.442695
      %v2151 = vpow.pop %v2150
      %v2152 = vmul.f32 %v2140, 1.442695
      %v2153 = vpow.pop %v2152
      %v2154 = vmul.f32 %v2141, 1.442695
      %v2155 = vpow.pop %v2154
      %v2156 = vmul.f32 %v2142, 1.442695
      %v2157 = vpow.pop %v2156
      %v2158 = vmul.f32 %v2143, 1.442695
      %v2159 = vpow.pop %v2158
      %v2160 = vsel %vm592, %v2145, 0.0
      %2161 = vadd.xlane.f32.xlu0 %v2160
      %v2162 = vpop.xlane.xlu0 %2161
      %v2163 = vsel %vm592, %v2147, 0.0
      %2164 = vadd.xlane.f32.xlu0 %v2163
      %v2165 = vpop.xlane.xlu0 %2164
      %v2166 = vsel %vm592, %v2149, 0.0
      %2167 = vadd.xlane.f32.xlu0 %v2166
      %v2168 = vpop.xlane.xlu0 %2167
      %v2169 = vsel %vm592, %v2151, 0.0
      %2170 = vadd.xlane.f32.xlu0 %v2169
      %v2171 = vpop.xlane.xlu0 %2170
      %v2172 = vsel %vm592, %v2153, 0.0
      %2173 = vadd.xlane.f32.xlu0 %v2172
      %v2174 = vpop.xlane.xlu0 %2173
      %v2175 = vsel %vm592, %v2155, 0.0
      %2176 = vadd.xlane.f32.xlu0 %v2175
      %v2177 = vpop.xlane.xlu0 %2176
      %v2178 = vsel %vm592, %v2157, 0.0
      %2179 = vadd.xlane.f32.xlu0 %v2178
      %v2180 = vpop.xlane.xlu0 %2179
      %v2181 = vsel %vm592, %v2159, 0.0
      %2182 = vadd.xlane.f32.xlu0 %v2181
      %v2183 = vpop.xlane.xlu0 %2182
      %v2184 = vrcp.pop %v2162
      %v2185 = vrcp.pop %v2165
      %v2186 = vrcp.pop %v2168
      %v2187 = vrcp.pop %v2171
      %v2188 = vrcp.pop %v2174
      %v2189 = vrcp.pop %v2177
      %v2190 = vrcp.pop %v2180
      %v2191 = vrcp.pop %v2183
      %v2192 = vmul.f32 %v2145, %v2184
      %v2193 = vmul.f32 %v2147, %v2185
      %v2194 = vmul.f32 %v2149, %v2186
      %v2195 = vmul.f32 %v2151, %v2187
      %v2196 = vmul.f32 %v2153, %v2188
      %v2197 = vmul.f32 %v2155, %v2189
      %v2198 = vmul.f32 %v2157, %v2190
      %v2199 = vmul.f32 %v2159, %v2191
      %v2200 = vpack.c.bf16 %v2193, %v2192
      %v2201 = vpack.c.bf16 %v2195, %v2194
      %v2202 = vpack.c.bf16 %v2197, %v2196
      %v2203 = vpack.c.bf16 %v2199, %v2198
      %2204 = vrot.lane.b32.xlu0 %v385, 40
      %v2205 = vpop.permute.xlu0 %2204
      %v2208 = vsel %vm592, %v2200, 0
      %2210 = vmatprep.subr.bf16.mxu0 0
      %2211 = vmatpush1.bf16.msra.mxu0 %v2205
      %2212 = vmatprep.subr.bf16.mxu0 0
      %2213 = vmatpush1.bf16.msra.mxu0 0
      %2214 = vmatprep.subr.bf16.mxu0 0
      %2215 = vmatpush1.bf16.msra.mxu0 0
      %2216 = vmatprep.subr.bf16.mxu0 0
      %2217 = vmatpush1.bf16.msra.mxu0 0
      %2218 = vmatprep.subr.bf16.mxu0 0
      %2219 = vmatpush1.bf16.msra.mxu0 0
      %2220 = vmatprep.subr.bf16.mxu0 0
      %2221 = vmatpush1.bf16.msra.mxu0 0
      %2222 = vmatprep.subr.bf16.mxu0 0
      %2223 = vmatpush1.bf16.msra.mxu0 0
      %2224 = vmatprep.subr.bf16.mxu0 0
      %2225 = vmatpush1.bf16.msra.mxu0 0
      %2226 = vmatprep.subr.bf16.mxu0 0
      %2227 = vmatpush1.bf16.msra.mxu0 0
      %2228 = vmatprep.subr.bf16.mxu0 0
      %2229 = vmatpush1.bf16.msra.mxu0 0
      %2230 = vmatprep.subr.bf16.mxu0 0
      %2231 = vmatpush1.bf16.msra.mxu0 0
      %2232 = vmatprep.subr.bf16.mxu0 0
      %2233 = vmatpush1.bf16.msra.mxu0 0
      %2234 = vmatprep.subr.bf16.mxu0 0
      %2235 = vmatpush1.bf16.msra.mxu0 0
      %2236 = vmatprep.subr.bf16.mxu0 0
      %2237 = vmatpush1.bf16.msra.mxu0 0
      %2238 = vmatprep.subr.bf16.mxu0 0
      %2239 = vmatpush1.bf16.msra.mxu0 0
      %2240 = vmatprep.subr.bf16.mxu0 0
      %2241 = vmatpush1.bf16.msra.mxu0 0
      %2242 = vmatprep.mubr.bf16.mxu0 0
      %2243 = vmatmul.mubr.bf16.gmra.mrb[0].mxu0 %v2208
      %v2244 = vpop.f32.mrb[0].mxu0
      %v2245 = vadd.f32 0.0, %v2244
      %v2246 = vpop.f32.mrb[0].mxu0
      %v2247 = vpop.f32.mrb[0].mxu0
      %v2248 = vadd.f32 0.0, %v2247
      %v2249 = vpop.f32.mrb[0].mxu0
      %2250 = vdwg.mxu0
      %2251 = vrot.lane.b32.xlu0 %v386, 40
      %v2252 = vpop.permute.xlu0 %2251
      %v2255 = vsel %vm592, %v2201, 0
      %2257 = vmatprep.subr.bf16.mxu0 0
      %2258 = vmatpush1.bf16.msra.mxu0 %v2252
      %2259 = vmatprep.subr.bf16.mxu0 0
      %2260 = vmatpush1.bf16.msra.mxu0 0
      %2261 = vmatprep.subr.bf16.mxu0 0
      %2262 = vmatpush1.bf16.msra.mxu0 0
      %2263 = vmatprep.subr.bf16.mxu0 0
      %2264 = vmatpush1.bf16.msra.mxu0 0
      %2265 = vmatprep.subr.bf16.mxu0 0
      %2266 = vmatpush1.bf16.msra.mxu0 0
      %2267 = vmatprep.subr.bf16.mxu0 0
      %2268 = vmatpush1.bf16.msra.mxu0 0
      %2269 = vmatprep.subr.bf16.mxu0 0
      %2270 = vmatpush1.bf16.msra.mxu0 0
      %2271 = vmatprep.subr.bf16.mxu0 0
      %2272 = vmatpush1.bf16.msra.mxu0 0
      %2273 = vmatprep.subr.bf16.mxu0 0
      %2274 = vmatpush1.bf16.msra.mxu0 0
      %2275 = vmatprep.subr.bf16.mxu0 0
      %2276 = vmatpush1.bf16.msra.mxu0 0
      %2277 = vmatprep.subr.bf16.mxu0 0
      %2278 = vmatpush1.bf16.msra.mxu0 0
      %2279 = vmatprep.subr.bf16.mxu0 0
      %2280 = vmatpush1.bf16.msra.mxu0 0
      %2281 = vmatprep.subr.bf16.mxu0 0
      %2282 = vmatpush1.bf16.msra.mxu0 0
      %2283 = vmatprep.subr.bf16.mxu0 0
      %2284 = vmatpush1.bf16.msra.mxu0 0
      %2285 = vmatprep.subr.bf16.mxu0 0
      %2286 = vmatpush1.bf16.msra.mxu0 0
      %2287 = vmatprep.subr.bf16.mxu0 0
      %2288 = vmatpush1.bf16.msra.mxu0 0
      %2289 = vmatprep.mubr.bf16.mxu0 0
      %2290 = vmatmul.mubr.bf16.gmra.mrb[0].mxu0 %v2255
      %v2291 = vpop.f32.mrb[0].mxu0
      %v2292 = vadd.f32 0.0, %v2291
      %v2293 = vpop.f32.mrb[0].mxu0
      %v2294 = vpop.f32.mrb[0].mxu0
      %v2295 = vadd.f32 0.0, %v2294
      %v2296 = vpop.f32.mrb[0].mxu0
      %2297 = vdwg.mxu0
      %2298 = vrot.lane.b32.xlu0 %v387, 40
      %v2299 = vpop.permute.xlu0 %2298
      %v2302 = vsel %vm592, %v2202, 0
      %2304 = vmatprep.subr.bf16.mxu0 0
      %2305 = vmatpush1.bf16.msra.mxu0 %v2299
      %2306 = vmatprep.subr.bf16.mxu0 0
      %2307 = vmatpush1.bf16.msra.mxu0 0
      %2308 = vmatprep.subr.bf16.mxu0 0
      %2309 = vmatpush1.bf16.msra.mxu0 0
      %2310 = vmatprep.subr.bf16.mxu0 0
      %2311 = vmatpush1.bf16.msra.mxu0 0
      %2312 = vmatprep.subr.bf16.mxu0 0
      %2313 = vmatpush1.bf16.msra.mxu0 0
      %2314 = vmatprep.subr.bf16.mxu0 0
      %2315 = vmatpush1.bf16.msra.mxu0 0
      %2316 = vmatprep.subr.bf16.mxu0 0
      %2317 = vmatpush1.bf16.msra.mxu0 0
      %2318 = vmatprep.subr.bf16.mxu0 0
      %2319 = vmatpush1.bf16.msra.mxu0 0
      %2320 = vmatprep.subr.bf16.mxu0 0
      %2321 = vmatpush1.bf16.msra.mxu0 0
      %2322 = vmatprep.subr.bf16.mxu0 0
      %2323 = vmatpush1.bf16.msra.mxu0 0
      %2324 = vmatprep.subr.bf16.mxu0 0
      %2325 = vmatpush1.bf16.msra.mxu0 0
      %2326 = vmatprep.subr.bf16.mxu0 0
      %2327 = vmatpush1.bf16.msra.mxu0 0
      %2328 = vmatprep.subr.bf16.mxu0 0
      %2329 = vmatpush1.bf16.msra.mxu0 0
      %2330 = vmatprep.subr.bf16.mxu0 0
      %2331 = vmatpush1.bf16.msra.mxu0 0
      %2332 = vmatprep.subr.bf16.mxu0 0
      %2333 = vmatpush1.bf16.msra.mxu0 0
      %2334 = vmatprep.subr.bf16.mxu0 0
      %2335 = vmatpush1.bf16.msra.mxu0 0
      %2336 = vmatprep.mubr.bf16.mxu0 0
      %2337 = vmatmul.mubr.bf16.gmra.mrb[0].mxu0 %v2302
      %v2338 = vpop.f32.mrb[0].mxu0
      %v2339 = vadd.f32 0.0, %v2338
      %v2340 = vpop.f32.mrb[0].mxu0
      %v2341 = vpop.f32.mrb[0].mxu0
      %v2342 = vadd.f32 0.0, %v2341
      %v2343 = vpop.f32.mrb[0].mxu0
      %2344 = vdwg.mxu0
      %2345 = vrot.lane.b32.xlu0 %v388, 40
      %v2346 = vpop.permute.xlu0 %2345
      %v2349 = vsel %vm592, %v2203, 0
      %2351 = vmatprep.subr.bf16.mxu0 0
      %2352 = vmatpush1.bf16.msra.mxu0 %v2346
      %2353 = vmatprep.subr.bf16.mxu0 0
      %2354 = vmatpush1.bf16.msra.mxu0 0
      %2355 = vmatprep.subr.bf16.mxu0 0
      %2356 = vmatpush1.bf16.msra.mxu0 0
      %2357 = vmatprep.subr.bf16.mxu0 0
      %2358 = vmatpush1.bf16.msra.mxu0 0
      %2359 = vmatprep.subr.bf16.mxu0 0
      %2360 = vmatpush1.bf16.msra.mxu0 0
      %2361 = vmatprep.subr.bf16.mxu0 0
      %2362 = vmatpush1.bf16.msra.mxu0 0
      %2363 = vmatprep.subr.bf16.mxu0 0
      %2364 = vmatpush1.bf16.msra.mxu0 0
      %2365 = vmatprep.subr.bf16.mxu0 0
      %2366 = vmatpush1.bf16.msra.mxu0 0
      %2367 = vmatprep.subr.bf16.mxu0 0
      %2368 = vmatpush1.bf16.msra.mxu0 0
      %2369 = vmatprep.subr.bf16.mxu0 0
      %2370 = vmatpush1.bf16.msra.mxu0 0
      %2371 = vmatprep.subr.bf16.mxu0 0
      %2372 = vmatpush1.bf16.msra.mxu0 0
      %2373 = vmatprep.subr.bf16.mxu0 0
      %2374 = vmatpush1.bf16.msra.mxu0 0
      %2375 = vmatprep.subr.bf16.mxu0 0
      %2376 = vmatpush1.bf16.msra.mxu0 0
      %2377 = vmatprep.subr.bf16.mxu0 0
      %2378 = vmatpush1.bf16.msra.mxu0 0
      %2379 = vmatprep.subr.bf16.mxu0 0
      %2380 = vmatpush1.bf16.msra.mxu0 0
      %2381 = vmatprep.subr.bf16.mxu0 0
      %2382 = vmatpush1.bf16.msra.mxu0 0
      %2383 = vmatprep.mubr.bf16.mxu0 0
      %2384 = vmatmul.mubr.bf16.gmra.mrb[0].mxu0 %v2349
      %v2385 = vpop.f32.mrb[0].mxu0
      %v2386 = vadd.f32 0.0, %v2385
      %v2387 = vpop.f32.mrb[0].mxu0
      %v2388 = vpop.f32.mrb[0].mxu0
      %v2389 = vadd.f32 0.0, %v2388
      %v2390 = vpop.f32.mrb[0].mxu0
      %2391 = vdwg.mxu0
      %v2392 = vpack.c.bf16 %v2248, %v2245
      %v2393 = vpack.c.bf16 %v2295, %v2292
      %v2394 = vpack.c.bf16 %v2342, %v2339
      %v2395 = vpack.c.bf16 %v2389, %v2386
      %2400 = vrot.lane.b32.xlu0 %v2392, 24
      %v2401 = vpop.permute.xlu0 %2400
      %2402 = vrot.lane.b32.xlu0 %v2393, 24
      %v2403 = vpop.permute.xlu0 %2402
      %2404 = vrot.lane.b32.xlu0 %v2394, 24
      %v2405 = vpop.permute.xlu0 %2404
      %2406 = vrot.lane.b32.xlu0 %v2395, 24
      %v2407 = vpop.permute.xlu0 %2406
      %vm2412 = vcmask 261312
      %2413 = vst.msk [vmem:[#allocation2] sm:$0xff] %vm2412, %v2401
      %2414 = vst.msk [vmem:[#allocation2 + $0x8] sm:$0xff] %vm2412, %v2403
      %2415 = vst.msk [vmem:[#allocation2 + $0x10] sm:$0xff] %vm2412, %v2405
      %2416 = vst.msk [vmem:[#allocation2 + $0x18] sm:$0xff] %vm2412, %v2407
      %v2417 = vld [vmem:[#allocation2] sm:$0xff]
      %v2418 = vld [vmem:[#allocation2 + $0x8] sm:$0xff]
      %v2419 = vld [vmem:[#allocation2 + $0x10] sm:$0xff]
      %v2420 = vld [vmem:[#allocation2 + $0x18] sm:$0xff]
      %v2421 = vld [vmem:[%s3] sm:$0xf]
      %v2422 = vld [vmem:[%s3 + $0x4] sm:$0xf]
      %v2423 = vld [vmem:[%s3 + $0x8] sm:$0xf]
      %v2424 = vld [vmem:[%s3 + $0xc] sm:$0xf]
      %v2425 = vld [vmem:[%s4] sm:$0x1]
      %v2427 = vlaneseq
      %v2428 = vshrl.u32 %v2427, 7
      %v2429 = vsub.s32 0, %v2428
      %v2430 = vrot.slane %v2425, %v2429
      %v2436 = vunpack.c.l.b16 %v2421
      %v2437 = vunpack.c.l.b16 %v2422
      %v2438 = vunpack.c.l.b16 %v2423
      %v2439 = vunpack.c.l.b16 %v2424
      %v2440 = vpack.c.b16 %v2437, %v2436
      %v2441 = vpack.c.b16 %v2439, %v2438
      %v2445 = vsel %vm307, %v2417, 0
      %v2448 = vsel %vm307, %v2418, 0
      %v2451 = vsel %vm307, %v2419, 0
      %v2454 = vsel %vm307, %v2420, 0
      %2456 = vmatprep.subr.bf16.mxu0 0
      %2457 = vmatpush1.bf16.msra.mxu0 %v2440
      %2458 = vmatprep.subr.bf16.mxu0 0
      %2459 = vmatpush1.bf16.msra.mxu0 %v2441
      %2460 = vmatprep.subr.bf16.mxu0 0
      %2461 = vmatpush1.bf16.msra.mxu0 0
      %2462 = vmatprep.subr.bf16.mxu0 0
      %2463 = vmatpush1.bf16.msra.mxu0 0
      %2464 = vmatprep.subr.bf16.mxu0 0
      %2465 = vmatpush1.bf16.msra.mxu0 0
      %2466 = vmatprep.subr.bf16.mxu0 0
      %2467 = vmatpush1.bf16.msra.mxu0 0
      %2468 = vmatprep.subr.bf16.mxu0 0
      %2469 = vmatpush1.bf16.msra.mxu0 0
      %2470 = vmatprep.subr.bf16.mxu0 0
      %2471 = vmatpush1.bf16.msra.mxu0 0
      %2472 = vmatprep.subr.bf16.mxu0 0
      %2473 = vmatpush1.bf16.msra.mxu0 0
      %2474 = vmatprep.subr.bf16.mxu0 0
      %2475 = vmatpush1.bf16.msra.mxu0 0
      %2476 = vmatprep.subr.bf16.mxu0 0
      %2477 = vmatpush1.bf16.msra.mxu0 0
      %2478 = vmatprep.subr.bf16.mxu0 0
      %2479 = vmatpush1.bf16.msra.mxu0 0
      %2480 = vmatprep.subr.bf16.mxu0 0
      %2481 = vmatpush1.bf16.msra.mxu0 0
      %2482 = vmatprep.subr.bf16.mxu0 0
      %2483 = vmatpush1.bf16.msra.mxu0 0
      %2484 = vmatprep.subr.bf16.mxu0 0
      %2485 = vmatpush1.bf16.msra.mxu0 0
      %2486 = vmatprep.subr.bf16.mxu0 0
      %2487 = vmatpush1.bf16.msra.mxu0 0
      %2488 = vmatprep.mubr.bf16.mxu0 0
      %2489 = vmatmul.mubr.bf16.gmra.mrb[0].mxu0 %v2445
      %v2490 = vpop.f32.mrb[0].mxu0
      %v2491 = vadd.f32 %v2430, %v2490
      %v2492 = vpop.f32.mrb[0].mxu0
      %v2493 = vpop.f32.mrb[0].mxu0
      %v2494 = vadd.f32 %v2430, %v2493
      %v2495 = vpop.f32.mrb[0].mxu0
      %2496 = vmatprep.mubr.bf16.mxu0 0
      %2497 = vmatmul.mubr.bf16.gmra.mrb[0].mxu0 %v2448
      %v2498 = vpop.f32.mrb[0].mxu0
      %v2499 = vadd.f32 %v2430, %v2498
      %v2500 = vpop.f32.mrb[0].mxu0
      %v2501 = vpop.f32.mrb[0].mxu0
      %v2502 = vadd.f32 %v2430, %v2501
      %v2503 = vpop.f32.mrb[0].mxu0
      %2504 = vmatprep.mubr.bf16.mxu0 0
      %2505 = vmatmul.mubr.bf16.gmra.mrb[0].mxu0 %v2451
      %v2506 = vpop.f32.mrb[0].mxu0
      %v2507 = vadd.f32 %v2430, %v2506
      %v2508 = vpop.f32.mrb[0].mxu0
      %v2509 = vpop.f32.mrb[0].mxu0
      %v2510 = vadd.f32 %v2430, %v2509
      %v2511 = vpop.f32.mrb[0].mxu0
      %2512 = vmatprep.mubr.bf16.mxu0 0
      %2513 = vmatmul.mubr.bf16.gmra.mrb[0].mxu0 %v2454
      %v2514 = vpop.f32.mrb[0].mxu0
      %v2515 = vadd.f32 %v2430, %v2514
      %v2516 = vpop.f32.mrb[0].mxu0
      %v2517 = vpop.f32.mrb[0].mxu0
      %v2518 = vadd.f32 %v2430, %v2517
      %v2519 = vpop.f32.mrb[0].mxu0
      %2520 = vdwg.mxu0
      %v2521 = vpack.c.bf16 %v2494, %v2491
      %v2522 = vpack.c.bf16 %v2502, %v2499
      %v2523 = vpack.c.bf16 %v2510, %v2507
      %v2524 = vpack.c.bf16 %v2518, %v2515
      %v2529 = vunpack.c.l.b16 %v2521
      %v2530 = vunpack.c.h.b16 %v2521
      %v2531 = vunpack.c.l.b16 %v2522
      %v2532 = vunpack.c.h.b16 %v2522
      %v2533 = vunpack.c.l.b16 %v2523
      %v2534 = vunpack.c.h.b16 %v2523
      %v2535 = vunpack.c.l.b16 %v2524
      %v2536 = vunpack.c.h.b16 %v2524
      %v2537 = vpack.c.b16 %v2529, %v2529
      %v2538 = vpack.c.b16 %v2530, %v2530
      %v2539 = vpack.c.b16 %v2531, %v2531
      %v2540 = vpack.c.b16 %v2532, %v2532
      %v2541 = vpack.c.b16 %v2533, %v2533
      %v2542 = vpack.c.b16 %v2534, %v2534
      %v2543 = vpack.c.b16 %v2535, %v2535
      %v2544 = vpack.c.b16 %v2536, %v2536
      %vm2553 = vcmask 257024
      %2554 = vst.msk [vmem:[%s253] sm:$0xf] %vm2553, %v2537
      %2555 = vst.msk [vmem:[%s253 + $0x4] sm:$0xf] %vm2553, %v2538
      %2556 = vst.msk [vmem:[%s253 + $0x8] sm:$0xf] %vm2553, %v2539
      %2557 = vst.msk [vmem:[%s253 + $0xc] sm:$0xf] %vm2553, %v2540
      %2558 = vst.msk [vmem:[%s253 + $0x10] sm:$0xf] %vm2553, %v2541
      %2559 = vst.msk [vmem:[%s253 + $0x14] sm:$0xf] %vm2553, %v2542
      %2560 = vst.msk [vmem:[%s253 + $0x18] sm:$0xf] %vm2553, %v2543
      %2561 = vst.msk [vmem:[%s253 + $0x1c] sm:$0xf] %vm2553, %v2544
      %s2562 = smul.u32 8, %s17
      %p2563 = scmp.lt.s32.totalorder %s2562, 31
      %s2564 = scalar_select %p2563, %s2562, 31
      %s2565 = smul.addr %s2564, 4
      %s2566 = scalar_lea.vmem %s6, %s2565
      // Predicated region
      $region45: #{tpu_custom_call.1} parent=43 // pred_check
        %p2567 = pneg %p166
      $region46: #{tpu_custom_call.1} parent=43 // pred_check_branch
        %2569 = sbr.rel (%p2567) target = $region48
      $region47: #{tpu_custom_call.1} parent=43 // pred_region
        %s2570 = smul.u32 8, %s17
      $region48: #{tpu_custom_call.1} parent=43 // pred_fallthru
        _
    $region44: #{tpu_custom_call.1} parent=5 // pred_fallthru
      _
    %p2571 = scmp.le.s32.totalorder 2, %s12
    // Predicated region
    $region49: #{tpu_custom_call.1} parent=5 // pred_check
      %p2572 = pneg %p2571
    $region50: #{tpu_custom_call.1} parent=5 // pred_check_branch
      %2574 = sbr.rel (%p2572) target = $region52
    $region51: #{tpu_custom_call.1} parent=5 // pred_region
      %s2575 = ssub.s32 %s12, 2
      // Predicated region
      $region53: #{tpu_custom_call.1} parent=51 // pred_check
        %p2576 = pneg %p172
      $region54: #{tpu_custom_call.1} parent=51 // pred_check_branch
        %2578 = sbr.rel (%p2576) target = $region56
      $region55: #{tpu_custom_call.1} parent=51 // pred_region
        %s2579 = smul.u32 8, %s18
        %p2580 = scmp.lt.s32.totalorder %s2579, 31
        %s2581 = scalar_select %p2580, %s2579, 31
        %s2582 = smul.addr %s2581, 4
        %s2583 = scalar_lea.vmem %s6, %s2582
      $region56: #{tpu_custom_call.1} parent=51 // pred_fallthru
        _
    $region52: #{tpu_custom_call.1} parent=5 // pred_fallthru
      _
  $region6: #{tpu_custom_call.1} parent=0 // loop_footer
    %s16 = sadd.s32 1, %s12
  $region7: #{tpu_custom_call.1} parent=0 // loop_footer_branch
    %11 = sbr.rel target = $region3
  $region8: #{tpu_custom_call.1} parent=0 // loop_exit
    _

</llo_original>
